<compile_context>
chip_gen: v6e
topology: v6e:2x2x1
jax: 0.10.0
libtpu: 0.0.40
codegen_flags: <defaults>
</compile_context>

<pallas_src>
import functools

import jax
import jax.numpy as jnp
from jax.experimental import pallas as pl
from jax.experimental.pallas import tpu as pltpu

D_IN, D_H1, D_H2, D_OUT = 784, 128, 256, 10
D_OUT_PAD = 128    # lane-dense output width
TB = 256           # batch tile (multiple of 256 -> full MXU passes)


def mlp_kernel(x_ref, w1_ref, b1_ref, w2_ref, b2_ref, w3_ref, b3_ref, o_ref):
    # x arrives as raw f32 from HBM; cast to bf16 on the VPU for full-rate MXU use.
    x = x_ref[...].astype(jnp.bfloat16)                                   # [TB, 784]
    h1 = jnp.dot(x, w1_ref[...], preferred_element_type=jnp.float32) + b1_ref[...]
    h1 = jnp.maximum(h1, 0.0).astype(jnp.bfloat16)                        # relu, bf16 for MXU
    h2 = jnp.dot(h1, w2_ref[...], preferred_element_type=jnp.float32) + b2_ref[...]
    h2 = jnp.maximum(h2, 0.0).astype(jnp.bfloat16)
    out = jnp.dot(h2, w3_ref[...], preferred_element_type=jnp.float32) + b3_ref[...]
    o_ref[...] = out.astype(o_ref.dtype)                                  # [TB, 128] dense store


@functools.partial(jax.jit, static_argnames=("tb",))
def minst_nn_forward(x, params, tb=TB):
    """x: [B, 784] float32. Returns [B, 10] float32."""
    w1, b1, w2, b2, w3, b3 = params
    B = x.shape[0]

    # Tiny one-time weight prep (<0.3 MB): bf16 for the MXU; last layer padded
    # 10 -> 128 output lanes so the kernel's store stays an unmasked dense vst.
    w1_b = w1.astype(jnp.bfloat16)
    w2_b = w2.astype(jnp.bfloat16)
    w3_p = jnp.zeros((D_H2, D_OUT_PAD), jnp.bfloat16).at[:, :D_OUT].set(
        w3.astype(jnp.bfloat16))
    b3_p = jnp.zeros((1, D_OUT_PAD), jnp.float32).at[:, :D_OUT].set(b3)

    const = lambda shape: pl.BlockSpec(shape, lambda i: (0, 0))

    out_padded = pl.pallas_call(
        mlp_kernel,
        out_shape=jax.ShapeDtypeStruct((B, D_OUT_PAD), jnp.float32),
        grid=(pl.cdiv(B, tb),),
        in_specs=[
            pl.BlockSpec((tb, D_IN), lambda i: (i, 0)),   # x: batch-tiled, remainder masked
            const((D_IN, D_H1)), const((1, D_H1)),        # weights/biases: VMEM-resident
            const((D_H1, D_H2)), const((1, D_H2)),
            const((D_H2, D_OUT_PAD)), const((1, D_OUT_PAD)),
        ],
        out_specs=pl.BlockSpec((tb, D_OUT_PAD), lambda i: (i, 0)),
        compiler_params=pltpu.CompilerParams(
            dimension_semantics=("parallel",)),           # megacore sharding on v7x
    )(x, w1_b, b1, w2_b, b2, w3_p, b3_p)

    return out_padded[:, :D_OUT]


def init_params(key):
    """Deterministic init mimicking PyTorch nn.Linear default (uniform +/- 1/sqrt(fan_in))."""
    ks = jax.random.split(key, 6)

    def linear(kw, kb, fan_in, fan_out):
        bound = 1.0 / jnp.sqrt(fan_in)
        w = jax.random.uniform(kw, (fan_in, fan_out), jnp.float32, -bound, bound)
        b = jax.random.uniform(kb, (1, fan_out), jnp.float32, -bound, bound)
        return w, b

    w1, b1 = linear(ks[0], ks[1], D_IN, D_H1)
    w2, b2 = linear(ks[2], ks[3], D_H1, D_H2)
    w3, b3 = linear(ks[4], ks[5], D_H2, D_OUT)
    return (w1, b1, w2, b2, w3, b3)


def reference_forward(x, params):
    w1, b1, w2, b2, w3, b3 = params
    h1 = jnp.maximum(x @ w1 + b1, 0.0)
    h2 = jnp.maximum(h1 @ w2 + b2, 0.0)
    return h2 @ w3 + b3


if __name__ == "__main__":
    B = 300  # not a multiple of the 256-row tile -> exercises the masked remainder block
    x = jax.random.normal(jax.random.PRNGKey(0), (B, D_IN), dtype=jnp.float32)
    params = init_params(jax.random.PRNGKey(42))

    out = minst_nn_forward(x, params)
    out = jax.block_until_ready(out)

    ref = reference_forward(x, params)            # f32 reference
    assert out.shape == (B, D_OUT)
    # bf16 MXU inputs with f32 accumulation -> loosened tolerance vs the f32 reference.
    assert jnp.allclose(out, ref, atol=5e-2, rtol=5e-2), float(jnp.max(jnp.abs(out - ref)))

    print("KERNEL_OK")
</pallas_src>

<mosaic_0001>
module attributes {stable_mosaic.version = 11 : i64} {
  func.func @mlp_kernel(%arg0: i32, %arg1: memref<256x784xf32, #tpu.memory_space<vmem>>, %arg2: memref<784x128xbf16, #tpu.memory_space<vmem>>, %arg3: memref<1x128xf32, #tpu.memory_space<vmem>>, %arg4: memref<128x256xbf16, #tpu.memory_space<vmem>>, %arg5: memref<1x256xf32, #tpu.memory_space<vmem>>, %arg6: memref<256x128xbf16, #tpu.memory_space<vmem>>, %arg7: memref<1x128xf32, #tpu.memory_space<vmem>>, %arg8: memref<256x128xf32, #tpu.memory_space<vmem>>) attributes {dimension_semantics = [#tpu.dimension_semantics<parallel>], iteration_bounds = array<i64: 2>, scalar_prefetch = 0 : i64, scratch_operands = 0 : i64, tpu.core_type = #tpu.core_type<tc>, window_params = [{transform_indices = @transform_0, window_bounds = array<i64: 256, 784>}, {pipeline_mode = #tpu.pipeline_mode<synchronous>, transform_indices = @transform_1, window_bounds = array<i64: 784, 128>}, {pipeline_mode = #tpu.pipeline_mode<synchronous>, transform_indices = @transform_2, window_bounds = array<i64: 1, 128>}, {pipeline_mode = #tpu.pipeline_mode<synchronous>, transform_indices = @transform_3, window_bounds = array<i64: 128, 256>}, {pipeline_mode = #tpu.pipeline_mode<synchronous>, transform_indices = @transform_4, window_bounds = array<i64: 1, 256>}, {pipeline_mode = #tpu.pipeline_mode<synchronous>, transform_indices = @transform_5, window_bounds = array<i64: 256, 128>}, {pipeline_mode = #tpu.pipeline_mode<synchronous>, transform_indices = @transform_6, window_bounds = array<i64: 1, 128>}, {transform_indices = @transform_7, window_bounds = array<i64: 256, 128>}]} {
    %c0 = arith.constant 0 : index
    %c0_0 = arith.constant 0 : index
    %0 = vector.load %arg1[%c0, %c0_0] : memref<256x784xf32, #tpu.memory_space<vmem>>, vector<256x784xf32>
    %1 = arith.truncf %0 : vector<256x784xf32> to vector<256x784xbf16>
    %c0_1 = arith.constant 0 : index
    %c0_2 = arith.constant 0 : index
    %2 = vector.load %arg2[%c0_1, %c0_2] : memref<784x128xbf16, #tpu.memory_space<vmem>>, vector<784x128xbf16>
    %cst = arith.constant dense<0.000000e+00> : vector<256x128xf32>
    %3 = tpu.matmul %1, %2, %cst {dimension_numbers = #tpu.dot_dimension_numbers<[1], [0], [0], [1], [0, 0, 1, 1], [], []>} : vector<256x784xbf16>, vector<784x128xbf16>, vector<256x128xf32> -> vector<256x128xf32>
    %c0_3 = arith.constant 0 : index
    %c0_4 = arith.constant 0 : index
    %4 = vector.load %arg3[%c0_3, %c0_4] : memref<1x128xf32, #tpu.memory_space<vmem>>, vector<1x128xf32>
    %5 = vector.broadcast %4 : vector<1x128xf32> to vector<256x128xf32>
    %6 = arith.addf %3, %5 : vector<256x128xf32>
    %cst_5 = arith.constant 0.000000e+00 : f32
    %7 = vector.broadcast %cst_5 : f32 to vector<256x128xf32>
    %8 = arith.maximumf %6, %7 : vector<256x128xf32>
    %9 = arith.truncf %8 : vector<256x128xf32> to vector<256x128xbf16>
    %c0_6 = arith.constant 0 : index
    %c0_7 = arith.constant 0 : index
    %10 = vector.load %arg4[%c0_6, %c0_7] : memref<128x256xbf16, #tpu.memory_space<vmem>>, vector<128x256xbf16>
    %cst_8 = arith.constant dense<0.000000e+00> : vector<256x256xf32>
    %11 = tpu.matmul %9, %10, %cst_8 {dimension_numbers = #tpu.dot_dimension_numbers<[1], [0], [0], [1], [0, 0, 1, 1], [], []>} : vector<256x128xbf16>, vector<128x256xbf16>, vector<256x256xf32> -> vector<256x256xf32>
    %c0_9 = arith.constant 0 : index
    %c0_10 = arith.constant 0 : index
    %12 = vector.load %arg5[%c0_9, %c0_10] : memref<1x256xf32, #tpu.memory_space<vmem>>, vector<1x256xf32>
    %13 = vector.broadcast %12 : vector<1x256xf32> to vector<256x256xf32>
    %14 = arith.addf %11, %13 : vector<256x256xf32>
    %cst_11 = arith.constant 0.000000e+00 : f32
    %15 = vector.broadcast %cst_11 : f32 to vector<256x256xf32>
    %16 = arith.maximumf %14, %15 : vector<256x256xf32>
    %17 = arith.truncf %16 : vector<256x256xf32> to vector<256x256xbf16>
    %c0_12 = arith.constant 0 : index
    %c0_13 = arith.constant 0 : index
    %18 = vector.load %arg6[%c0_12, %c0_13] : memref<256x128xbf16, #tpu.memory_space<vmem>>, vector<256x128xbf16>
    %cst_14 = arith.constant dense<0.000000e+00> : vector<256x128xf32>
    %19 = tpu.matmul %17, %18, %cst_14 {dimension_numbers = #tpu.dot_dimension_numbers<[1], [0], [0], [1], [0, 0, 1, 1], [], []>} : vector<256x256xbf16>, vector<256x128xbf16>, vector<256x128xf32> -> vector<256x128xf32>
    %c0_15 = arith.constant 0 : index
    %c0_16 = arith.constant 0 : index
    %20 = vector.load %arg7[%c0_15, %c0_16] : memref<1x128xf32, #tpu.memory_space<vmem>>, vector<1x128xf32>
    %21 = vector.broadcast %20 : vector<1x128xf32> to vector<256x128xf32>
    %22 = arith.addf %19, %21 : vector<256x128xf32>
    %c0_17 = arith.constant 0 : index
    %c0_18 = arith.constant 0 : index
    %23 = vector.load %arg8[%c0_17, %c0_18] : memref<256x128xf32, #tpu.memory_space<vmem>>, vector<256x128xf32>
    tpu.vector_store %arg8[%c0_17, %c0_18], %22 {strides = array<i32>} : memref<256x128xf32, #tpu.memory_space<vmem>>, vector<256x128xf32>,
    return
  }
  func.func @transform_0(%arg0: i32) -> (i32, i32) {
    %c0_i32 = arith.constant 0 : i32
    %c0_i32_0 = arith.constant 0 : i32
    return %arg0, %c0_i32 : i32, i32
  }
  func.func @transform_1(%arg0: i32) -> (i32, i32) {
    %c0_i32 = arith.constant 0 : i32
    %c0_i32_0 = arith.constant 0 : i32
    %c0_i32_1 = arith.constant 0 : i32
    return %c0_i32, %c0_i32_0 : i32, i32
  }
  func.func @transform_2(%arg0: i32) -> (i32, i32) {
    %c0_i32 = arith.constant 0 : i32
    %c0_i32_0 = arith.constant 0 : i32
    %c0_i32_1 = arith.constant 0 : i32
    return %c0_i32, %c0_i32_0 : i32, i32
  }
  func.func @transform_3(%arg0: i32) -> (i32, i32) {
    %c0_i32 = arith.constant 0 : i32
    %c0_i32_0 = arith.constant 0 : i32
    %c0_i32_1 = arith.constant 0 : i32
    return %c0_i32, %c0_i32_0 : i32, i32
  }
  func.func @transform_4(%arg0: i32) -> (i32, i32) {
    %c0_i32 = arith.constant 0 : i32
    %c0_i32_0 = arith.constant 0 : i32
    %c0_i32_1 = arith.constant 0 : i32
    return %c0_i32, %c0_i32_0 : i32, i32
  }
  func.func @transform_5(%arg0: i32) -> (i32, i32) {
    %c0_i32 = arith.constant 0 : i32
    %c0_i32_0 = arith.constant 0 : i32
    %c0_i32_1 = arith.constant 0 : i32
    return %c0_i32, %c0_i32_0 : i32, i32
  }
  func.func @transform_6(%arg0: i32) -> (i32, i32) {
    %c0_i32 = arith.constant 0 : i32
    %c0_i32_0 = arith.constant 0 : i32
    %c0_i32_1 = arith.constant 0 : i32
    return %c0_i32, %c0_i32_0 : i32, i32
  }
  func.func @transform_7(%arg0: i32) -> (i32, i32) {
    %c0_i32 = arith.constant 0 : i32
    %c0_i32_0 = arith.constant 0 : i32
    return %arg0, %c0_i32 : i32, i32
  }
}

</mosaic_0001>

<llo_original>
// kernel: minst_nn_forward.1
$region0: #{minst_nn_forward.1}
  #allocation0 [shape = 'u32[]', space=smem, size = 0x4, offset = 0x4, fixed_abs, tag = 'smem constant byte address 0x4 - core index']
  #allocation1 [shape = 'u32[144,128]{1,0:T(1,128)}', space=vmem, size = 0x12000, scoped, tag = 'internal scratch']
  %s0 = inlined_call_operand.vmem [shape: f32[300,784], index: 0, kind: input, shape index: {}]
  %s1 = inlined_call_operand.vmem [shape: bf16[784,128], index: 1, kind: input, shape index: {}]
  %s2 = inlined_call_operand.vmem [shape: f32[1,128], index: 2, kind: input, shape index: {}]
  %s3 = inlined_call_operand.vmem [shape: bf16[128,256], index: 3, kind: input, shape index: {}]
  %s4 = inlined_call_operand.vmem [shape: f32[1,256], index: 4, kind: input, shape index: {}]
  %s5 = inlined_call_operand.vmem [shape: bf16[256,128], index: 5, kind: input, shape index: {}]
  %s6 = inlined_call_operand.vmem [shape: f32[1,128], index: 6, kind: input, shape index: {}]
  %s7 = inlined_call_operand.vmem [shape: f32[300,128], index: 7, kind: output, shape index: {}]
  %s8 = sld [smem:[#allocation0]]
  $region109: #{minst_nn_forward.1} parent=0
    _
  %s10 = ssub.s32 1, %s8
  %s11 = scalar_select 0, %s10, %s8
  $region1: #{minst_nn_forward.1} parent=0
    #allocation2 [shape = 'u8[262144]{0}', space=vmem, size = 0x40000, scoped, tag = 'output window, operand 0']
    loop: start=0, step=1, limit=4
    $region2: #{minst_nn_forward.1} parent=1 // loop_pre_header
      _
    $region3: #{minst_nn_forward.1} parent=1 // loop_header
      %s13 = sphi 0, %s17
      %p14 = scmp.ge.s32.totalorder %s13, 4
      %s23 = sphi 0, %s25
      %s26 = sphi 0, %s23
      %s27 = sphi 0, %s26
      %s43 = sphi 0, %s27
      %s47 = sphi 0, %s47
      %s49 = sphi 0, %s47
      %s50 = sphi 0, %s49
      %s64 = sphi 0, %s50
      %s68 = sphi 0, %s68
      %s70 = sphi 0, %s68
      %s71 = sphi 0, %s70
      %s85 = sphi 0, %s71
      %s89 = sphi 0, %s89
      %s91 = sphi 0, %s89
      %s92 = sphi 0, %s91
      %s106 = sphi 0, %s92
      %s110 = sphi 0, %s110
      %s112 = sphi 0, %s110
      %s113 = sphi 0, %s112
      %s127 = sphi 0, %s113
      %s131 = sphi 0, %s131
      %s133 = sphi 0, %s131
      %s134 = sphi 0, %s133
      %s148 = sphi 0, %s134
      %s152 = sphi 0, %s152
      %s154 = sphi 0, %s152
      %s155 = sphi 0, %s154
      %s169 = sphi 0, %s155
      %s175 = sphi 0, %s177
      %s178 = sphi 0, %s175
      %s179 = sphi 0, %s178
      %s195 = sphi 0, %s179
    $region4: #{minst_nn_forward.1} parent=1 // loop_header_branch
      %16 = sbr.rel (%p14) target = $region8
    $region5: #{minst_nn_forward.1} parent=1 // loop_body
      %s18 = ssub.s32 %s13, 1
      %s19 = ssub.s32 %s13, 2
      %s20 = sadd.s32 %s13, 1
      %s21 = ssub.s32 %s13, %s20
      %p22 = scmp.eq.s32.totalorder %s21, 0
      %s24 = sadd.s32 %s23, 1
      %s25 = scalar_select %p22, %s23, %s24
      %p28 = pneg %p22
      %p29 = scmp.eq.s32.totalorder %s13, 1
      %p30 = por %p28, %p29
      %p31 = scmp.ne.s32.totalorder %s23, %s26
      %p32 = scmp.eq.s32.totalorder %s13, 0
      %p33 = por %p31, %p32
      %p34 = scmp.ne.s32.totalorder %s23, %s26
      %p35 = scmp.eq.s32.totalorder %s18, 1
      %p36 = por %p34, %p35
      %p37 = scmp.ne.s32.totalorder %s26, %s27
      %p38 = scmp.eq.s32.totalorder %s18, 0
      %p39 = por %p37, %p38
      %p40 = scmp.ne.s32.totalorder %s26, %s27
      %p41 = scmp.eq.s32.totalorder %s19, 1
      %p42 = por %p40, %p41
      %p44 = scmp.ne.s32.totalorder %s27, %s43
      %p45 = scmp.eq.s32.totalorder %s19, 0
      %p46 = por %p44, %p45
      %s48 = sadd.s32 %s47, 1
      %p51 = scmp.eq.s32.totalorder %s13, 1
      %p52 = scmp.ne.s32.totalorder %s47, %s49
      %p53 = scmp.eq.s32.totalorder %s13, 0
      %p54 = por %p52, %p53
      %p55 = scmp.ne.s32.totalorder %s47, %s49
      %p56 = scmp.eq.s32.totalorder %s18, 1
      %p57 = por %p55, %p56
      %p58 = scmp.ne.s32.totalorder %s49, %s50
      %p59 = scmp.eq.s32.totalorder %s18, 0
      %p60 = por %p58, %p59
      %p61 = scmp.ne.s32.totalorder %s49, %s50
      %p62 = scmp.eq.s32.totalorder %s19, 1
      %p63 = por %p61, %p62
      %p65 = scmp.ne.s32.totalorder %s50, %s64
      %p66 = scmp.eq.s32.totalorder %s19, 0
      %p67 = por %p65, %p66
      %s69 = sadd.s32 %s68, 1
      %p72 = scmp.eq.s32.totalorder %s13, 1
      %p73 = scmp.ne.s32.totalorder %s68, %s70
      %p74 = scmp.eq.s32.totalorder %s13, 0
      %p75 = por %p73, %p74
      %p76 = scmp.ne.s32.totalorder %s68, %s70
      %p77 = scmp.eq.s32.totalorder %s18, 1
      %p78 = por %p76, %p77
      %p79 = scmp.ne.s32.totalorder %s70, %s71
      %p80 = scmp.eq.s32.totalorder %s18, 0
      %p81 = por %p79, %p80
      %p82 = scmp.ne.s32.totalorder %s70, %s71
      %p83 = scmp.eq.s32.totalorder %s19, 1
      %p84 = por %p82, %p83
      %p86 = scmp.ne.s32.totalorder %s71, %s85
      %p87 = scmp.eq.s32.totalorder %s19, 0
      %p88 = por %p86, %p87
      %s90 = sadd.s32 %s89, 1
      %p93 = scmp.eq.s32.totalorder %s13, 1
      %p94 = scmp.ne.s32.totalorder %s89, %s91
      %p95 = scmp.eq.s32.totalorder %s13, 0
      %p96 = por %p94, %p95
      %p97 = scmp.ne.s32.totalorder %s89, %s91
      %p98 = scmp.eq.s32.totalorder %s18, 1
      %p99 = por %p97, %p98
      %p100 = scmp.ne.s32.totalorder %s91, %s92
      %p101 = scmp.eq.s32.totalorder %s18, 0
      %p102 = por %p100, %p101
      %p103 = scmp.ne.s32.totalorder %s91, %s92
      %p104 = scmp.eq.s32.totalorder %s19, 1
      %p105 = por %p103, %p104
      %p107 = scmp.ne.s32.totalorder %s92, %s106
      %p108 = scmp.eq.s32.totalorder %s19, 0
      %p109 = por %p107, %p108
      %s111 = sadd.s32 %s110, 1
      %p114 = scmp.eq.s32.totalorder %s13, 1
      %p115 = scmp.ne.s32.totalorder %s110, %s112
      %p116 = scmp.eq.s32.totalorder %s13, 0
      %p117 = por %p115, %p116
      %p118 = scmp.ne.s32.totalorder %s110, %s112
      %p119 = scmp.eq.s32.totalorder %s18, 1
      %p120 = por %p118, %p119
      %p121 = scmp.ne.s32.totalorder %s112, %s113
      %p122 = scmp.eq.s32.totalorder %s18, 0
      %p123 = por %p121, %p122
      %p124 = scmp.ne.s32.totalorder %s112, %s113
      %p125 = scmp.eq.s32.totalorder %s19, 1
      %p126 = por %p124, %p125
      %p128 = scmp.ne.s32.totalorder %s113, %s127
      %p129 = scmp.eq.s32.totalorder %s19, 0
      %p130 = por %p128, %p129
      %s132 = sadd.s32 %s131, 1
      %p135 = scmp.eq.s32.totalorder %s13, 1
      %p136 = scmp.ne.s32.totalorder %s131, %s133
      %p137 = scmp.eq.s32.totalorder %s13, 0
      %p138 = por %p136, %p137
      %p139 = scmp.ne.s32.totalorder %s131, %s133
      %p140 = scmp.eq.s32.totalorder %s18, 1
      %p141 = por %p139, %p140
      %p142 = scmp.ne.s32.totalorder %s133, %s134
      %p143 = scmp.eq.s32.totalorder %s18, 0
      %p144 = por %p142, %p143
      %p145 = scmp.ne.s32.totalorder %s133, %s134
      %p146 = scmp.eq.s32.totalorder %s19, 1
      %p147 = por %p145, %p146
      %p149 = scmp.ne.s32.totalorder %s134, %s148
      %p150 = scmp.eq.s32.totalorder %s19, 0
      %p151 = por %p149, %p150
      %s153 = sadd.s32 %s152, 1
      %p156 = scmp.eq.s32.totalorder %s13, 1
      %p157 = scmp.ne.s32.totalorder %s152, %s154
      %p158 = scmp.eq.s32.totalorder %s13, 0
      %p159 = por %p157, %p158
      %p160 = scmp.ne.s32.totalorder %s152, %s154
      %p161 = scmp.eq.s32.totalorder %s18, 1
      %p162 = por %p160, %p161
      %p163 = scmp.ne.s32.totalorder %s154, %s155
      %p164 = scmp.eq.s32.totalorder %s18, 0
      %p165 = por %p163, %p164
      %p166 = scmp.ne.s32.totalorder %s154, %s155
      %p167 = scmp.eq.s32.totalorder %s19, 1
      %p168 = por %p166, %p167
      %p170 = scmp.ne.s32.totalorder %s155, %s169
      %p171 = scmp.eq.s32.totalorder %s19, 0
      %p172 = por %p170, %p171
      %s173 = ssub.s32 %s13, %s20
      %p174 = scmp.eq.s32.totalorder %s173, 0
      %s176 = sadd.s32 %s175, 1
      %s177 = scalar_select %p174, %s175, %s176
      %p180 = pneg %p174
      %p181 = scmp.eq.s32.totalorder %s13, 1
      %p182 = por %p180, %p181
      %p183 = scmp.ne.s32.totalorder %s175, %s178
      %p184 = scmp.eq.s32.totalorder %s13, 0
      %p185 = por %p183, %p184
      %p186 = scmp.ne.s32.totalorder %s175, %s178
      %p187 = scmp.eq.s32.totalorder %s18, 1
      %p188 = por %p186, %p187
      %p189 = scmp.ne.s32.totalorder %s178, %s179
      %p190 = scmp.eq.s32.totalorder %s18, 0
      %p191 = por %p189, %p190
      %p192 = scmp.ne.s32.totalorder %s178, %s179
      %p193 = scmp.eq.s32.totalorder %s19, 1
      %p194 = por %p192, %p193
      %p196 = scmp.ne.s32.totalorder %s179, %s195
      %p197 = scmp.eq.s32.totalorder %s19, 0
      %p198 = por %p196, %p197
      %p199 = scmp.le.s32.totalorder 1, %s13
      %p200 = scmp.lt.s32.totalorder %s13, 3
      %p201 = pnand %p199, %p200
      %p202 = pneg %p201
      // Predicated region
      $region9: #{minst_nn_forward.1} parent=5 // pred_check
        _
      $region10: #{minst_nn_forward.1} parent=5 // pred_check_branch
        %204 = sbr.rel (%p201) target = $region12
      $region11: #{minst_nn_forward.1} parent=5 // pred_region
        %s205 = ssub.s32 %s13, 1
        // Predicated region
        $region13: #{minst_nn_forward.1} parent=11 // pred_check
          %p206 = pneg %p60
        $region14: #{minst_nn_forward.1} parent=11 // pred_check_branch
          %208 = sbr.rel (%p206) target = $region16
        $region15: #{minst_nn_forward.1} parent=11 // pred_region
          _
        $region16: #{minst_nn_forward.1} parent=11 // pred_fallthru
          _
        // Predicated region
        $region17: #{minst_nn_forward.1} parent=11 // pred_check
          %p209 = pneg %p81
        $region18: #{minst_nn_forward.1} parent=11 // pred_check_branch
          %211 = sbr.rel (%p209) target = $region20
        $region19: #{minst_nn_forward.1} parent=11 // pred_region
          _
        $region20: #{minst_nn_forward.1} parent=11 // pred_fallthru
          _
        // Predicated region
        $region21: #{minst_nn_forward.1} parent=11 // pred_check
          %p212 = pneg %p102
        $region22: #{minst_nn_forward.1} parent=11 // pred_check_branch
          %214 = sbr.rel (%p212) target = $region24
        $region23: #{minst_nn_forward.1} parent=11 // pred_region
          _
        $region24: #{minst_nn_forward.1} parent=11 // pred_fallthru
          _
        // Predicated region
        $region25: #{minst_nn_forward.1} parent=11 // pred_check
          %p215 = pneg %p123
        $region26: #{minst_nn_forward.1} parent=11 // pred_check_branch
          %217 = sbr.rel (%p215) target = $region28
        $region27: #{minst_nn_forward.1} parent=11 // pred_region
          _
        $region28: #{minst_nn_forward.1} parent=11 // pred_fallthru
          _
        // Predicated region
        $region29: #{minst_nn_forward.1} parent=11 // pred_check
          %p218 = pneg %p144
        $region30: #{minst_nn_forward.1} parent=11 // pred_check_branch
          %220 = sbr.rel (%p218) target = $region32
        $region31: #{minst_nn_forward.1} parent=11 // pred_region
          _
        $region32: #{minst_nn_forward.1} parent=11 // pred_fallthru
          _
        // Predicated region
        $region33: #{minst_nn_forward.1} parent=11 // pred_check
          %p221 = pneg %p165
        $region34: #{minst_nn_forward.1} parent=11 // pred_check_branch
          %223 = sbr.rel (%p221) target = $region36
        $region35: #{minst_nn_forward.1} parent=11 // pred_region
          _
        $region36: #{minst_nn_forward.1} parent=11 // pred_fallthru
          _
      $region12: #{minst_nn_forward.1} parent=5 // pred_fallthru
        _
      %p224 = scmp.lt.s32.totalorder %s13, 2
      // Predicated region
      $region37: #{minst_nn_forward.1} parent=5 // pred_check
        %p225 = pneg %p224
      $region38: #{minst_nn_forward.1} parent=5 // pred_check_branch
        %227 = sbr.rel (%p225) target = $region40
      $region39: #{minst_nn_forward.1} parent=5 // pred_region
        // Predicated region
        $region41: #{minst_nn_forward.1} parent=39 // pred_check
          %p228 = pneg %p33
        $region42: #{minst_nn_forward.1} parent=39 // pred_check_branch
          %230 = sbr.rel (%p228) target = $region44
        $region43: #{minst_nn_forward.1} parent=39 // pred_region
          %s231 = smul.u32 32, %s13
          %s232 = ssub.s32 38, %s231
          %p233 = scmp.lt.s32.totalorder %s232, 32
          %s234 = scalar_select %p233, %s232, 32
          %s235 = smul.u32 128, %s234
          %s236 = smul.u32 %s235, 7
          %p237 = scmp.lt.s32.totalorder %s231, 37
          %s238 = scalar_select %p237, %s231, 37
          %s239 = smul.addr %s238, 7
          %s240 = smul.addr %s239, 8
          %s241 = scalar_lea.vmem %s0, %s240
          %s242 = smul.u32 32, %s13
          %s243 = ssub.s32 38, %s242
          %p244 = scmp.lt.s32.totalorder %s243, 32
          %s245 = scalar_select %p244, %s243, 32
          %s246 = smul.u32 128, %s245
          %s247 = smul.u32 %s246, 7
        $region44: #{minst_nn_forward.1} parent=39 // pred_fallthru
          _
      $region40: #{minst_nn_forward.1} parent=5 // pred_fallthru
        _
      %p248 = scmp.le.s32.totalorder 1, %s13
      %p249 = scmp.lt.s32.totalorder %s13, 3
      %p250 = pnand %p248, %p249
      %p251 = pneg %p250
      // Predicated region
      $region45: #{minst_nn_forward.1} parent=5 // pred_check
        _
      $region46: #{minst_nn_forward.1} parent=5 // pred_check_branch
        %253 = sbr.rel (%p250) target = $region48
      $region47: #{minst_nn_forward.1} parent=5 // pred_region
        %s254 = ssub.s32 %s13, 1
        %s255 = smul.u32 32, %s18
        %s256 = ssub.s32 38, %s255
        %p257 = scmp.lt.s32.totalorder %s256, 32
        %s258 = scalar_select %p257, %s256, 32
        %s259 = smul.u32 128, %s258
        %s260 = smul.u32 %s259, 7
        %p261 = scmp.lt.s32.totalorder %s255, 37
        %s262 = scalar_select %p261, %s255, 37
        %s263 = smul.addr %s262, 7
        %s264 = smul.addr %s263, 8
        %s265 = scalar_lea.vmem %s0, %s264
        %p266 = pneg %p39
        %p267 = pneg %p36
        %p268 = pneg %p60
        %p269 = pneg %p57
        %p270 = pneg %p81
        %p271 = pneg %p78
        %p272 = pneg %p102
        %p273 = pneg %p99
        %p274 = pneg %p123
        %p275 = pneg %p120
        %p276 = pneg %p144
        %p277 = pneg %p141
        %p278 = pneg %p165
        %p279 = pneg %p162
        %p280 = pneg %p191
        %p281 = pneg %p188
        %s282 = sand.u32 %s178, 1
        %s283 = sand.u32 %s178, 1
        %s284 = smul.addr %s283, 256
        %s285 = scalar_lea.vmem [#allocation2], %s284
        %s286 = smul.u32 32, %s18
        %s287 = ssub.s32 38, %s286
        %p288 = scmp.lt.s32.totalorder %s287, 32
        %s289 = scalar_select %p288, %s287, 32
        %s290 = smul.u32 128, %s289
        %s291 = smul.u32 %s290, 7
        %p292 = scmp.lt.s32.totalorder %s286, 37
        %s293 = scalar_select %p292, %s286, 37
        %s294 = smul.addr %s293, 7
        %s295 = smul.addr %s294, 8
        %s296 = scalar_lea.vmem %s0, %s295
        %s297 = smul.u32 32, %s18
        %s298 = ssub.s32 38, %s297
        %p299 = scmp.lt.s32.totalorder %s298, 32
        %s300 = scalar_select %p299, %s298, 32
        %s301 = smul.u32 128, %s300
        %s302 = smul.u32 %s301, 7
        %s303 = smul.u32 32, %s18
        %s304 = ssub.s32 38, %s303
        %p305 = scmp.lt.s32.totalorder %s304, 32
        %s306 = scalar_select %p305, %s304, 32
        %s307 = smul.u32 128, %s306
        %v309 = vld [vmem:[%s296] sm:$0xff]
        %v310 = vld [vmem:[%s296 + $0x8] sm:$0xff]
        %v311 = vld [vmem:[%s296 + $0x10] sm:$0xff]
        %v312 = vld [vmem:[%s296 + $0x18] sm:$0xff]
        %v313 = vld [vmem:[%s296 + $0x20] sm:$0xff]
        %v314 = vld [vmem:[%s296 + $0x28] sm:$0xff]
        %v315 = vld [vmem:[%s296 + $0x30] sm:$0xff]
        %v316 = vld [vmem:[%s296 + $0x38] sm:$0xff]
        %v317 = vld [vmem:[%s296 + $0x40] sm:$0xff]
        %v318 = vld [vmem:[%s296 + $0x48] sm:$0xff]
        %v319 = vld [vmem:[%s296 + $0x50] sm:$0xff]
        %v320 = vld [vmem:[%s296 + $0x58] sm:$0xff]
        %v321 = vld [vmem:[%s296 + $0x60] sm:$0xff]
        %v322 = vld [vmem:[%s296 + $0x68] sm:$0xff]
        %v323 = vld [vmem:[%s296 + $0x70] sm:$0xff]
        %v324 = vld [vmem:[%s296 + $0x78] sm:$0xff]
        %v325 = vld [vmem:[%s296 + $0x80] sm:$0xff]
        %v326 = vld [vmem:[%s296 + $0x88] sm:$0xff]
        %v327 = vld [vmem:[%s296 + $0x90] sm:$0xff]
        %v328 = vld [vmem:[%s296 + $0x98] sm:$0xff]
        %v329 = vld [vmem:[%s296 + $0xa0] sm:$0xff]
        %v330 = vld [vmem:[%s296 + $0xa8] sm:$0xff]
        %v331 = vld [vmem:[%s296 + $0xb0] sm:$0xff]
        %v332 = vld [vmem:[%s296 + $0xb8] sm:$0xff]
        %v333 = vld [vmem:[%s296 + $0xc0] sm:$0xff]
        %v334 = vld [vmem:[%s296 + $0xc8] sm:$0xff]
        %v335 = vld [vmem:[%s296 + $0xd0] sm:$0xff]
        %v336 = vld [vmem:[%s296 + $0xd8] sm:$0xff]
        %v337 = vld [vmem:[%s296 + $0xe0] sm:$0xff]
        %v338 = vld [vmem:[%s296 + $0xe8] sm:$0xff]
        %v339 = vld [vmem:[%s296 + $0xf0] sm:$0xff]
        %v340 = vld [vmem:[%s296 + $0xf8] sm:$0xff]
        %v341 = vld [vmem:[%s296 + $0x100] sm:$0xff]
        %v342 = vld [vmem:[%s296 + $0x108] sm:$0xff]
        %v343 = vld [vmem:[%s296 + $0x110] sm:$0xff]
        %v344 = vld [vmem:[%s296 + $0x118] sm:$0xff]
        %v345 = vld [vmem:[%s296 + $0x120] sm:$0xff]
        %v346 = vld [vmem:[%s296 + $0x128] sm:$0xff]
        %v347 = vld [vmem:[%s296 + $0x130] sm:$0xff]
        %v348 = vld [vmem:[%s296 + $0x138] sm:$0xff]
        %v349 = vld [vmem:[%s296 + $0x140] sm:$0xff]
        %v350 = vld [vmem:[%s296 + $0x148] sm:$0xff]
        %v351 = vld [vmem:[%s296 + $0x150] sm:$0xff]
        %v352 = vld [vmem:[%s296 + $0x158] sm:$0xff]
        %v353 = vld [vmem:[%s296 + $0x160] sm:$0xff]
        %v354 = vld [vmem:[%s296 + $0x168] sm:$0xff]
        %v355 = vld [vmem:[%s296 + $0x170] sm:$0xff]
        %v356 = vld [vmem:[%s296 + $0x178] sm:$0xff]
        %v357 = vld [vmem:[%s296 + $0x180] sm:$0xff]
        %v358 = vld [vmem:[%s296 + $0x188] sm:$0xff]
        %v359 = vld [vmem:[%s296 + $0x190] sm:$0xff]
        %v360 = vld [vmem:[%s296 + $0x198] sm:$0xff]
        %v361 = vld [vmem:[%s296 + $0x1a0] sm:$0xff]
        %v362 = vld [vmem:[%s296 + $0x1a8] sm:$0xff]
        %v363 = vld [vmem:[%s296 + $0x1b0] sm:$0xff]
        %v364 = vld [vmem:[%s296 + $0x1b8] sm:$0xff]
        %v365 = vld [vmem:[%s296 + $0x1c0] sm:$0xff]
        %v366 = vld [vmem:[%s296 + $0x1c8] sm:$0xff]
        %v367 = vld [vmem:[%s296 + $0x1d0] sm:$0xff]
        %v368 = vld [vmem:[%s296 + $0x1d8] sm:$0xff]
        %v369 = vld [vmem:[%s296 + $0x1e0] sm:$0xff]
        %v370 = vld [vmem:[%s296 + $0x1e8] sm:$0xff]
        %v371 = vld [vmem:[%s296 + $0x1f0] sm:$0xff]
        %v372 = vld [vmem:[%s296 + $0x1f8] sm:$0xff]
        %v373 = vld [vmem:[%s296 + $0x200] sm:$0xff]
        %v374 = vld [vmem:[%s296 + $0x208] sm:$0xff]
        %v375 = vld [vmem:[%s296 + $0x210] sm:$0xff]
        %v376 = vld [vmem:[%s296 + $0x218] sm:$0xff]
        %v377 = vld [vmem:[%s296 + $0x220] sm:$0xff]
        %v378 = vld [vmem:[%s296 + $0x228] sm:$0xff]
        %v379 = vld [vmem:[%s296 + $0x230] sm:$0xff]
        %v380 = vld [vmem:[%s296 + $0x238] sm:$0xff]
        %v381 = vld [vmem:[%s296 + $0x240] sm:$0xff]
        %v382 = vld [vmem:[%s296 + $0x248] sm:$0xff]
        %v383 = vld [vmem:[%s296 + $0x250] sm:$0xff]
        %v384 = vld [vmem:[%s296 + $0x258] sm:$0xff]
        %v385 = vld [vmem:[%s296 + $0x260] sm:$0xff]
        %v386 = vld [vmem:[%s296 + $0x268] sm:$0xff]
        %v387 = vld [vmem:[%s296 + $0x270] sm:$0xff]
        %v388 = vld [vmem:[%s296 + $0x278] sm:$0xff]
        %v389 = vld [vmem:[%s296 + $0x280] sm:$0xff]
        %v390 = vld [vmem:[%s296 + $0x288] sm:$0xff]
        %v391 = vld [vmem:[%s296 + $0x290] sm:$0xff]
        %v392 = vld [vmem:[%s296 + $0x298] sm:$0xff]
        %v393 = vld [vmem:[%s296 + $0x2a0] sm:$0xff]
        %v394 = vld [vmem:[%s296 + $0x2a8] sm:$0xff]
        %v395 = vld [vmem:[%s296 + $0x2b0] sm:$0xff]
        %v396 = vld [vmem:[%s296 + $0x2b8] sm:$0xff]
        %v397 = vld [vmem:[%s296 + $0x2c0] sm:$0xff]
        %v398 = vld [vmem:[%s296 + $0x2c8] sm:$0xff]
        %v399 = vld [vmem:[%s296 + $0x2d0] sm:$0xff]
        %v400 = vld [vmem:[%s296 + $0x2d8] sm:$0xff]
        %v401 = vld [vmem:[%s296 + $0x2e0] sm:$0xff]
        %v402 = vld [vmem:[%s296 + $0x2e8] sm:$0xff]
        %v403 = vld [vmem:[%s296 + $0x2f0] sm:$0xff]
        %v404 = vld [vmem:[%s296 + $0x2f8] sm:$0xff]
        %v405 = vld [vmem:[%s296 + $0x300] sm:$0xff]
        %v406 = vld [vmem:[%s296 + $0x308] sm:$0xff]
        %v407 = vld [vmem:[%s296 + $0x310] sm:$0xff]
        %v408 = vld [vmem:[%s296 + $0x318] sm:$0xff]
        %v409 = vld [vmem:[%s296 + $0x320] sm:$0xff]
        %v410 = vld [vmem:[%s296 + $0x328] sm:$0xff]
        %v411 = vld [vmem:[%s296 + $0x330] sm:$0xff]
        %v412 = vld [vmem:[%s296 + $0x338] sm:$0xff]
        %v413 = vld [vmem:[%s296 + $0x340] sm:$0xff]
        %v414 = vld [vmem:[%s296 + $0x348] sm:$0xff]
        %v415 = vld [vmem:[%s296 + $0x350] sm:$0xff]
        %v416 = vld [vmem:[%s296 + $0x358] sm:$0xff]
        %v417 = vld [vmem:[%s296 + $0x360] sm:$0xff]
        %v418 = vld [vmem:[%s296 + $0x368] sm:$0xff]
        %v419 = vld [vmem:[%s296 + $0x370] sm:$0xff]
        %v420 = vld [vmem:[%s296 + $0x378] sm:$0xff]
        %v421 = vld [vmem:[%s296 + $0x380] sm:$0xff]
        %v422 = vld [vmem:[%s296 + $0x388] sm:$0xff]
        %v423 = vld [vmem:[%s296 + $0x390] sm:$0xff]
        %v424 = vld [vmem:[%s296 + $0x398] sm:$0xff]
        %v425 = vld [vmem:[%s296 + $0x3a0] sm:$0xff]
        %v426 = vld [vmem:[%s296 + $0x3a8] sm:$0xff]
        %v427 = vld [vmem:[%s296 + $0x3b0] sm:$0xff]
        %v428 = vld [vmem:[%s296 + $0x3b8] sm:$0xff]
        %v429 = vld [vmem:[%s296 + $0x3c0] sm:$0xff]
        %v430 = vld [vmem:[%s296 + $0x3c8] sm:$0xff]
        %v431 = vld [vmem:[%s296 + $0x3d0] sm:$0xff]
        %v432 = vld [vmem:[%s296 + $0x3d8] sm:$0xff]
        %v433 = vld [vmem:[%s296 + $0x3e0] sm:$0xff]
        %v434 = vld [vmem:[%s296 + $0x3e8] sm:$0xff]
        %v435 = vld [vmem:[%s296 + $0x3f0] sm:$0xff]
        %v436 = vld [vmem:[%s296 + $0x3f8] sm:$0xff]
        %v437 = vld [vmem:[%s296 + $0x400] sm:$0xff]
        %v438 = vld [vmem:[%s296 + $0x408] sm:$0xff]
        %v439 = vld [vmem:[%s296 + $0x410] sm:$0xff]
        %v440 = vld [vmem:[%s296 + $0x418] sm:$0xff]
        %v441 = vld [vmem:[%s296 + $0x420] sm:$0xff]
        %v442 = vld [vmem:[%s296 + $0x428] sm:$0xff]
        %v443 = vld [vmem:[%s296 + $0x430] sm:$0xff]
        %v444 = vld [vmem:[%s296 + $0x438] sm:$0xff]
        %v445 = vld [vmem:[%s296 + $0x440] sm:$0xff]
        %v446 = vld [vmem:[%s296 + $0x448] sm:$0xff]
        %v447 = vld [vmem:[%s296 + $0x450] sm:$0xff]
        %v448 = vld [vmem:[%s296 + $0x458] sm:$0xff]
        %v449 = vld [vmem:[%s296 + $0x460] sm:$0xff]
        %v450 = vld [vmem:[%s296 + $0x468] sm:$0xff]
        %v451 = vld [vmem:[%s296 + $0x470] sm:$0xff]
        %v452 = vld [vmem:[%s296 + $0x478] sm:$0xff]
        %v453 = vld [vmem:[%s296 + $0x480] sm:$0xff]
        %v454 = vld [vmem:[%s296 + $0x488] sm:$0xff]
        %v455 = vld [vmem:[%s296 + $0x490] sm:$0xff]
        %v456 = vld [vmem:[%s296 + $0x498] sm:$0xff]
        %v457 = vld [vmem:[%s296 + $0x4a0] sm:$0xff]
        %v458 = vld [vmem:[%s296 + $0x4a8] sm:$0xff]
        %v459 = vld [vmem:[%s296 + $0x4b0] sm:$0xff]
        %v460 = vld [vmem:[%s296 + $0x4b8] sm:$0xff]
        %v461 = vld [vmem:[%s296 + $0x4c0] sm:$0xff]
        %v462 = vld [vmem:[%s296 + $0x4c8] sm:$0xff]
        %v463 = vld [vmem:[%s296 + $0x4d0] sm:$0xff]
        %v464 = vld [vmem:[%s296 + $0x4d8] sm:$0xff]
        %v465 = vld [vmem:[%s296 + $0x4e0] sm:$0xff]
        %v466 = vld [vmem:[%s296 + $0x4e8] sm:$0xff]
        %v467 = vld [vmem:[%s296 + $0x4f0] sm:$0xff]
        %v468 = vld [vmem:[%s296 + $0x4f8] sm:$0xff]
        %v469 = vld [vmem:[%s296 + $0x500] sm:$0xff]
        %v470 = vld [vmem:[%s296 + $0x508] sm:$0xff]
        %v471 = vld [vmem:[%s296 + $0x510] sm:$0xff]
        %v472 = vld [vmem:[%s296 + $0x518] sm:$0xff]
        %v473 = vld [vmem:[%s296 + $0x520] sm:$0xff]
        %v474 = vld [vmem:[%s296 + $0x528] sm:$0xff]
        %v475 = vld [vmem:[%s296 + $0x530] sm:$0xff]
        %v476 = vld [vmem:[%s296 + $0x538] sm:$0xff]
        %v477 = vld [vmem:[%s296 + $0x540] sm:$0xff]
        %v478 = vld [vmem:[%s296 + $0x548] sm:$0xff]
        %v479 = vld [vmem:[%s296 + $0x550] sm:$0xff]
        %v480 = vld [vmem:[%s296 + $0x558] sm:$0xff]
        %v481 = vld [vmem:[%s296 + $0x560] sm:$0xff]
        %v482 = vld [vmem:[%s296 + $0x568] sm:$0xff]
        %v483 = vld [vmem:[%s296 + $0x570] sm:$0xff]
        %v484 = vld [vmem:[%s296 + $0x578] sm:$0xff]
        %v485 = vld [vmem:[%s296 + $0x580] sm:$0xff]
        %v486 = vld [vmem:[%s296 + $0x588] sm:$0xff]
        %v487 = vld [vmem:[%s296 + $0x590] sm:$0xff]
        %v488 = vld [vmem:[%s296 + $0x598] sm:$0xff]
        %v489 = vld [vmem:[%s296 + $0x5a0] sm:$0xff]
        %v490 = vld [vmem:[%s296 + $0x5a8] sm:$0xff]
        %v491 = vld [vmem:[%s296 + $0x5b0] sm:$0xff]
        %v492 = vld [vmem:[%s296 + $0x5b8] sm:$0xff]
        %v493 = vld [vmem:[%s296 + $0x5c0] sm:$0xff]
        %v494 = vld [vmem:[%s296 + $0x5c8] sm:$0xff]
        %v495 = vld [vmem:[%s296 + $0x5d0] sm:$0xff]
        %v496 = vld [vmem:[%s296 + $0x5d8] sm:$0xff]
        %v497 = vld [vmem:[%s296 + $0x5e0] sm:$0xff]
        %v498 = vld [vmem:[%s296 + $0x5e8] sm:$0xff]
        %v499 = vld [vmem:[%s296 + $0x5f0] sm:$0xff]
        %v500 = vld [vmem:[%s296 + $0x5f8] sm:$0xff]
        %v501 = vld [vmem:[%s296 + $0x600] sm:$0xff]
        %v502 = vld [vmem:[%s296 + $0x608] sm:$0xff]
        %v503 = vld [vmem:[%s296 + $0x610] sm:$0xff]
        %v504 = vld [vmem:[%s296 + $0x618] sm:$0xff]
        %v505 = vld [vmem:[%s296 + $0x620] sm:$0xff]
        %v506 = vld [vmem:[%s296 + $0x628] sm:$0xff]
        %v507 = vld [vmem:[%s296 + $0x630] sm:$0xff]
        %v508 = vld [vmem:[%s296 + $0x638] sm:$0xff]
        %v509 = vld [vmem:[%s296 + $0x640] sm:$0xff]
        %v510 = vld [vmem:[%s296 + $0x648] sm:$0xff]
        %v511 = vld [vmem:[%s296 + $0x650] sm:$0xff]
        %v512 = vld [vmem:[%s296 + $0x658] sm:$0xff]
        %v513 = vld [vmem:[%s296 + $0x660] sm:$0xff]
        %v514 = vld [vmem:[%s296 + $0x668] sm:$0xff]
        %v515 = vld [vmem:[%s296 + $0x670] sm:$0xff]
        %v516 = vld [vmem:[%s296 + $0x678] sm:$0xff]
        %v517 = vld [vmem:[%s296 + $0x680] sm:$0xff]
        %v518 = vld [vmem:[%s296 + $0x688] sm:$0xff]
        %v519 = vld [vmem:[%s296 + $0x690] sm:$0xff]
        %v520 = vld [vmem:[%s296 + $0x698] sm:$0xff]
        %v521 = vld [vmem:[%s296 + $0x6a0] sm:$0xff]
        %v522 = vld [vmem:[%s296 + $0x6a8] sm:$0xff]
        %v523 = vld [vmem:[%s296 + $0x6b0] sm:$0xff]
        %v524 = vld [vmem:[%s296 + $0x6b8] sm:$0xff]
        %v525 = vld [vmem:[%s296 + $0x6c0] sm:$0xff]
        %v526 = vld [vmem:[%s296 + $0x6c8] sm:$0xff]
        %v527 = vld [vmem:[%s296 + $0x6d0] sm:$0xff]
        %v528 = vld [vmem:[%s296 + $0x6d8] sm:$0xff]
        %v529 = vld [vmem:[%s296 + $0x6e0] sm:$0xff]
        %v530 = vld [vmem:[%s296 + $0x6e8] sm:$0xff]
        %v531 = vld [vmem:[%s296 + $0x6f0] sm:$0xff]
        %v532 = vld [vmem:[%s296 + $0x6f8] sm:$0xff]
        %v533 = vpack.c.bf16 %v316, %v309
        %v534 = vpack.c.bf16 %v317, %v310
        %v535 = vpack.c.bf16 %v318, %v311
        %v536 = vpack.c.bf16 %v319, %v312
        %v537 = vpack.c.bf16 %v320, %v313
        %v538 = vpack.c.bf16 %v321, %v314
        %v539 = vpack.c.bf16 %v322, %v315
        %v540 = vpack.c.bf16 %v330, %v323
        %v541 = vpack.c.bf16 %v331, %v324
        %v542 = vpack.c.bf16 %v332, %v325
        %v543 = vpack.c.bf16 %v333, %v326
        %v544 = vpack.c.bf16 %v334, %v327
        %v545 = vpack.c.bf16 %v335, %v328
        %v546 = vpack.c.bf16 %v336, %v329
        %v547 = vpack.c.bf16 %v344, %v337
        %v548 = vpack.c.bf16 %v345, %v338
        %v549 = vpack.c.bf16 %v346, %v339
        %v550 = vpack.c.bf16 %v347, %v340
        %v551 = vpack.c.bf16 %v348, %v341
        %v552 = vpack.c.bf16 %v349, %v342
        %v553 = vpack.c.bf16 %v350, %v343
        %v554 = vpack.c.bf16 %v358, %v351
        %v555 = vpack.c.bf16 %v359, %v352
        %v556 = vpack.c.bf16 %v360, %v353
        %v557 = vpack.c.bf16 %v361, %v354
        %v558 = vpack.c.bf16 %v362, %v355
        %v559 = vpack.c.bf16 %v363, %v356
        %v560 = vpack.c.bf16 %v364, %v357
        %v561 = vpack.c.bf16 %v372, %v365
        %v562 = vpack.c.bf16 %v373, %v366
        %v563 = vpack.c.bf16 %v374, %v367
        %v564 = vpack.c.bf16 %v375, %v368
        %v565 = vpack.c.bf16 %v376, %v369
        %v566 = vpack.c.bf16 %v377, %v370
        %v567 = vpack.c.bf16 %v378, %v371
        %v568 = vpack.c.bf16 %v386, %v379
        %v569 = vpack.c.bf16 %v387, %v380
        %v570 = vpack.c.bf16 %v388, %v381
        %v571 = vpack.c.bf16 %v389, %v382
        %v572 = vpack.c.bf16 %v390, %v383
        %v573 = vpack.c.bf16 %v391, %v384
        %v574 = vpack.c.bf16 %v392, %v385
        %v575 = vpack.c.bf16 %v400, %v393
        %v576 = vpack.c.bf16 %v401, %v394
        %v577 = vpack.c.bf16 %v402, %v395
        %v578 = vpack.c.bf16 %v403, %v396
        %v579 = vpack.c.bf16 %v404, %v397
        %v580 = vpack.c.bf16 %v405, %v398
        %v581 = vpack.c.bf16 %v406, %v399
        %v582 = vpack.c.bf16 %v414, %v407
        %v583 = vpack.c.bf16 %v415, %v408
        %v584 = vpack.c.bf16 %v416, %v409
        %v585 = vpack.c.bf16 %v417, %v410
        %v586 = vpack.c.bf16 %v418, %v411
        %v587 = vpack.c.bf16 %v419, %v412
        %v588 = vpack.c.bf16 %v420, %v413
        %v589 = vpack.c.bf16 %v428, %v421
        %v590 = vpack.c.bf16 %v429, %v422
        %v591 = vpack.c.bf16 %v430, %v423
        %v592 = vpack.c.bf16 %v431, %v424
        %v593 = vpack.c.bf16 %v432, %v425
        %v594 = vpack.c.bf16 %v433, %v426
        %v595 = vpack.c.bf16 %v434, %v427
        %v596 = vpack.c.bf16 %v442, %v435
        %v597 = vpack.c.bf16 %v443, %v436
        %v598 = vpack.c.bf16 %v444, %v437
        %v599 = vpack.c.bf16 %v445, %v438
        %v600 = vpack.c.bf16 %v446, %v439
        %v601 = vpack.c.bf16 %v447, %v440
        %v602 = vpack.c.bf16 %v448, %v441
        %v603 = vpack.c.bf16 %v456, %v449
        %v604 = vpack.c.bf16 %v457, %v450
        %v605 = vpack.c.bf16 %v458, %v451
        %v606 = vpack.c.bf16 %v459, %v452
        %v607 = vpack.c.bf16 %v460, %v453
        %v608 = vpack.c.bf16 %v461, %v454
        %v609 = vpack.c.bf16 %v462, %v455
        %v610 = vpack.c.bf16 %v470, %v463
        %v611 = vpack.c.bf16 %v471, %v464
        %v612 = vpack.c.bf16 %v472, %v465
        %v613 = vpack.c.bf16 %v473, %v466
        %v614 = vpack.c.bf16 %v474, %v467
        %v615 = vpack.c.bf16 %v475, %v468
        %v616 = vpack.c.bf16 %v476, %v469
        %v617 = vpack.c.bf16 %v484, %v477
        %v618 = vpack.c.bf16 %v485, %v478
        %v619 = vpack.c.bf16 %v486, %v479
        %v620 = vpack.c.bf16 %v487, %v480
        %v621 = vpack.c.bf16 %v488, %v481
        %v622 = vpack.c.bf16 %v489, %v482
        %v623 = vpack.c.bf16 %v490, %v483
        %v624 = vpack.c.bf16 %v498, %v491
        %v625 = vpack.c.bf16 %v499, %v492
        %v626 = vpack.c.bf16 %v500, %v493
        %v627 = vpack.c.bf16 %v501, %v494
        %v628 = vpack.c.bf16 %v502, %v495
        %v629 = vpack.c.bf16 %v503, %v496
        %v630 = vpack.c.bf16 %v504, %v497
        %v631 = vpack.c.bf16 %v512, %v505
        %v632 = vpack.c.bf16 %v513, %v506
        %v633 = vpack.c.bf16 %v514, %v507
        %v634 = vpack.c.bf16 %v515, %v508
        %v635 = vpack.c.bf16 %v516, %v509
        %v636 = vpack.c.bf16 %v517, %v510
        %v637 = vpack.c.bf16 %v518, %v511
        %v638 = vpack.c.bf16 %v526, %v519
        %v639 = vpack.c.bf16 %v527, %v520
        %v640 = vpack.c.bf16 %v528, %v521
        %v641 = vpack.c.bf16 %v529, %v522
        %v642 = vpack.c.bf16 %v530, %v523
        %v643 = vpack.c.bf16 %v531, %v524
        %v644 = vpack.c.bf16 %v532, %v525
        %v645 = vld [vmem:[%s1] sm:$0xf]
        %v646 = vld [vmem:[%s1 + $0x4] sm:$0xf]
        %v647 = vld [vmem:[%s1 + $0x8] sm:$0xf]
        %v648 = vld [vmem:[%s1 + $0xc] sm:$0xf]
        %v649 = vld [vmem:[%s1 + $0x10] sm:$0xf]
        %v650 = vld [vmem:[%s1 + $0x14] sm:$0xf]
        %v651 = vld [vmem:[%s1 + $0x18] sm:$0xf]
        %v652 = vld [vmem:[%s1 + $0x1c] sm:$0xf]
        %v653 = vld [vmem:[%s1 + $0x20] sm:$0xf]
        %v654 = vld [vmem:[%s1 + $0x24] sm:$0xf]
        %v655 = vld [vmem:[%s1 + $0x28] sm:$0xf]
        %v656 = vld [vmem:[%s1 + $0x2c] sm:$0xf]
        %v657 = vld [vmem:[%s1 + $0x30] sm:$0xf]
        %v658 = vld [vmem:[%s1 + $0x34] sm:$0xf]
        %v659 = vld [vmem:[%s1 + $0x38] sm:$0xf]
        %v660 = vld [vmem:[%s1 + $0x3c] sm:$0xf]
        %v661 = vld [vmem:[%s1 + $0x40] sm:$0xf]
        %v662 = vld [vmem:[%s1 + $0x44] sm:$0xf]
        %v663 = vld [vmem:[%s1 + $0x48] sm:$0xf]
        %v664 = vld [vmem:[%s1 + $0x4c] sm:$0xf]
        %v665 = vld [vmem:[%s1 + $0x50] sm:$0xf]
        %v666 = vld [vmem:[%s1 + $0x54] sm:$0xf]
        %v667 = vld [vmem:[%s1 + $0x58] sm:$0xf]
        %v668 = vld [vmem:[%s1 + $0x5c] sm:$0xf]
        %v669 = vld [vmem:[%s1 + $0x60] sm:$0xf]
        %v670 = vld [vmem:[%s1 + $0x64] sm:$0xf]
        %v671 = vld [vmem:[%s1 + $0x68] sm:$0xf]
        %v672 = vld [vmem:[%s1 + $0x6c] sm:$0xf]
        %v673 = vld [vmem:[%s1 + $0x70] sm:$0xf]
        %v674 = vld [vmem:[%s1 + $0x74] sm:$0xf]
        %v675 = vld [vmem:[%s1 + $0x78] sm:$0xf]
        %v676 = vld [vmem:[%s1 + $0x7c] sm:$0xf]
        %v677 = vld [vmem:[%s1 + $0x80] sm:$0xf]
        %v678 = vld [vmem:[%s1 + $0x84] sm:$0xf]
        %v679 = vld [vmem:[%s1 + $0x88] sm:$0xf]
        %v680 = vld [vmem:[%s1 + $0x8c] sm:$0xf]
        %v681 = vld [vmem:[%s1 + $0x90] sm:$0xf]
        %v682 = vld [vmem:[%s1 + $0x94] sm:$0xf]
        %v683 = vld [vmem:[%s1 + $0x98] sm:$0xf]
        %v684 = vld [vmem:[%s1 + $0x9c] sm:$0xf]
        %v685 = vld [vmem:[%s1 + $0xa0] sm:$0xf]
        %v686 = vld [vmem:[%s1 + $0xa4] sm:$0xf]
        %v687 = vld [vmem:[%s1 + $0xa8] sm:$0xf]
        %v688 = vld [vmem:[%s1 + $0xac] sm:$0xf]
        %v689 = vld [vmem:[%s1 + $0xb0] sm:$0xf]
        %v690 = vld [vmem:[%s1 + $0xb4] sm:$0xf]
        %v691 = vld [vmem:[%s1 + $0xb8] sm:$0xf]
        %v692 = vld [vmem:[%s1 + $0xbc] sm:$0xf]
        %v693 = vld [vmem:[%s1 + $0xc0] sm:$0xf]
        %v694 = vld [vmem:[%s1 + $0xc4] sm:$0xf]
        %v695 = vld [vmem:[%s1 + $0xc8] sm:$0xf]
        %v696 = vld [vmem:[%s1 + $0xcc] sm:$0xf]
        %v697 = vld [vmem:[%s1 + $0xd0] sm:$0xf]
        %v698 = vld [vmem:[%s1 + $0xd4] sm:$0xf]
        %v699 = vld [vmem:[%s1 + $0xd8] sm:$0xf]
        %v700 = vld [vmem:[%s1 + $0xdc] sm:$0xf]
        %v701 = vld [vmem:[%s1 + $0xe0] sm:$0xf]
        %v702 = vld [vmem:[%s1 + $0xe4] sm:$0xf]
        %v703 = vld [vmem:[%s1 + $0xe8] sm:$0xf]
        %v704 = vld [vmem:[%s1 + $0xec] sm:$0xf]
        %v705 = vld [vmem:[%s1 + $0xf0] sm:$0xf]
        %v706 = vld [vmem:[%s1 + $0xf4] sm:$0xf]
        %v707 = vld [vmem:[%s1 + $0xf8] sm:$0xf]
        %v708 = vld [vmem:[%s1 + $0xfc] sm:$0xf]
        %v709 = vld [vmem:[%s1 + $0x100] sm:$0xf]
        %v710 = vld [vmem:[%s1 + $0x104] sm:$0xf]
        %v711 = vld [vmem:[%s1 + $0x108] sm:$0xf]
        %v712 = vld [vmem:[%s1 + $0x10c] sm:$0xf]
        %v713 = vld [vmem:[%s1 + $0x110] sm:$0xf]
        %v714 = vld [vmem:[%s1 + $0x114] sm:$0xf]
        %v715 = vld [vmem:[%s1 + $0x118] sm:$0xf]
        %v716 = vld [vmem:[%s1 + $0x11c] sm:$0xf]
        %v717 = vld [vmem:[%s1 + $0x120] sm:$0xf]
        %v718 = vld [vmem:[%s1 + $0x124] sm:$0xf]
        %v719 = vld [vmem:[%s1 + $0x128] sm:$0xf]
        %v720 = vld [vmem:[%s1 + $0x12c] sm:$0xf]
        %v721 = vld [vmem:[%s1 + $0x130] sm:$0xf]
        %v722 = vld [vmem:[%s1 + $0x134] sm:$0xf]
        %v723 = vld [vmem:[%s1 + $0x138] sm:$0xf]
        %v724 = vld [vmem:[%s1 + $0x13c] sm:$0xf]
        %v725 = vld [vmem:[%s1 + $0x140] sm:$0xf]
        %v726 = vld [vmem:[%s1 + $0x144] sm:$0xf]
        %v727 = vld [vmem:[%s1 + $0x148] sm:$0xf]
        %v728 = vld [vmem:[%s1 + $0x14c] sm:$0xf]
        %v729 = vld [vmem:[%s1 + $0x150] sm:$0xf]
        %v730 = vld [vmem:[%s1 + $0x154] sm:$0xf]
        %v731 = vld [vmem:[%s1 + $0x158] sm:$0xf]
        %v732 = vld [vmem:[%s1 + $0x15c] sm:$0xf]
        %v733 = vld [vmem:[%s1 + $0x160] sm:$0xf]
        %v734 = vld [vmem:[%s1 + $0x164] sm:$0xf]
        %v735 = vld [vmem:[%s1 + $0x168] sm:$0xf]
        %v736 = vld [vmem:[%s1 + $0x16c] sm:$0xf]
        %v737 = vld [vmem:[%s1 + $0x170] sm:$0xf]
        %v738 = vld [vmem:[%s1 + $0x174] sm:$0xf]
        %v739 = vld [vmem:[%s1 + $0x178] sm:$0xf]
        %v740 = vld [vmem:[%s1 + $0x17c] sm:$0xf]
        %v741 = vld [vmem:[%s1 + $0x180] sm:$0xf]
        %v742 = vld [vmem:[%s1 + $0x184] sm:$0xf]
        %v743 = vld [vmem:[%s2] sm:$0x1]
        %v745 = vlaneseq
        %v746 = vshrl.u32 %v745, 7
        %v747 = vsub.s32 0, %v746
        %v748 = vrot.slane %v743, %v747
        %v848 = vunpack.c.l.b16 %v645
        %v849 = vunpack.c.l.b16 %v646
        %v850 = vunpack.c.l.b16 %v647
        %v851 = vunpack.c.l.b16 %v648
        %v852 = vunpack.c.l.b16 %v649
        %v853 = vunpack.c.l.b16 %v650
        %v854 = vunpack.c.l.b16 %v651
        %v855 = vunpack.c.l.b16 %v652
        %v856 = vunpack.c.l.b16 %v653
        %v857 = vunpack.c.l.b16 %v654
        %v858 = vunpack.c.l.b16 %v655
        %v859 = vunpack.c.l.b16 %v656
        %v860 = vunpack.c.l.b16 %v657
        %v861 = vunpack.c.l.b16 %v658
        %v862 = vunpack.c.l.b16 %v659
        %v863 = vunpack.c.l.b16 %v660
        %v864 = vunpack.c.l.b16 %v661
        %v865 = vunpack.c.l.b16 %v662
        %v866 = vunpack.c.l.b16 %v663
        %v867 = vunpack.c.l.b16 %v664
        %v868 = vunpack.c.l.b16 %v665
        %v869 = vunpack.c.l.b16 %v666
        %v870 = vunpack.c.l.b16 %v667
        %v871 = vunpack.c.l.b16 %v668
        %v872 = vunpack.c.l.b16 %v669
        %v873 = vunpack.c.l.b16 %v670
        %v874 = vunpack.c.l.b16 %v671
        %v875 = vunpack.c.l.b16 %v672
        %v876 = vunpack.c.l.b16 %v673
        %v877 = vunpack.c.l.b16 %v674
        %v878 = vunpack.c.l.b16 %v675
        %v879 = vunpack.c.l.b16 %v676
        %v880 = vunpack.c.l.b16 %v677
        %v881 = vunpack.c.l.b16 %v678
        %v882 = vunpack.c.l.b16 %v679
        %v883 = vunpack.c.l.b16 %v680
        %v884 = vunpack.c.l.b16 %v681
        %v885 = vunpack.c.l.b16 %v682
        %v886 = vunpack.c.l.b16 %v683
        %v887 = vunpack.c.l.b16 %v684
        %v888 = vunpack.c.l.b16 %v685
        %v889 = vunpack.c.l.b16 %v686
        %v890 = vunpack.c.l.b16 %v687
        %v891 = vunpack.c.l.b16 %v688
        %v892 = vunpack.c.l.b16 %v689
        %v893 = vunpack.c.l.b16 %v690
        %v894 = vunpack.c.l.b16 %v691
        %v895 = vunpack.c.l.b16 %v692
        %v896 = vunpack.c.l.b16 %v693
        %v897 = vunpack.c.l.b16 %v694
        %v898 = vunpack.c.l.b16 %v695
        %v899 = vunpack.c.l.b16 %v696
        %v900 = vunpack.c.l.b16 %v697
        %v901 = vunpack.c.l.b16 %v698
        %v902 = vunpack.c.l.b16 %v699
        %v903 = vunpack.c.l.b16 %v700
        %v904 = vunpack.c.l.b16 %v701
        %v905 = vunpack.c.l.b16 %v702
        %v906 = vunpack.c.l.b16 %v703
        %v907 = vunpack.c.l.b16 %v704
        %v908 = vunpack.c.l.b16 %v705
        %v909 = vunpack.c.l.b16 %v706
        %v910 = vunpack.c.l.b16 %v707
        %v911 = vunpack.c.l.b16 %v708
        %v912 = vunpack.c.l.b16 %v709
        %v913 = vunpack.c.l.b16 %v710
        %v914 = vunpack.c.l.b16 %v711
        %v915 = vunpack.c.l.b16 %v712
        %v916 = vunpack.c.l.b16 %v713
        %v917 = vunpack.c.l.b16 %v714
        %v918 = vunpack.c.l.b16 %v715
        %v919 = vunpack.c.l.b16 %v716
        %v920 = vunpack.c.l.b16 %v717
        %v921 = vunpack.c.l.b16 %v718
        %v922 = vunpack.c.l.b16 %v719
        %v923 = vunpack.c.l.b16 %v720
        %v924 = vunpack.c.l.b16 %v721
        %v925 = vunpack.c.l.b16 %v722
        %v926 = vunpack.c.l.b16 %v723
        %v927 = vunpack.c.l.b16 %v724
        %v928 = vunpack.c.l.b16 %v725
        %v929 = vunpack.c.l.b16 %v726
        %v930 = vunpack.c.l.b16 %v727
        %v931 = vunpack.c.l.b16 %v728
        %v932 = vunpack.c.l.b16 %v729
        %v933 = vunpack.c.l.b16 %v730
        %v934 = vunpack.c.l.b16 %v731
        %v935 = vunpack.c.l.b16 %v732
        %v936 = vunpack.c.l.b16 %v733
        %v937 = vunpack.c.l.b16 %v734
        %v938 = vunpack.c.l.b16 %v735
        %v939 = vunpack.c.l.b16 %v736
        %v940 = vunpack.c.l.b16 %v737
        %v941 = vunpack.c.l.b16 %v738
        %v942 = vunpack.c.l.b16 %v739
        %v943 = vunpack.c.l.b16 %v740
        %v944 = vunpack.c.l.b16 %v741
        %v945 = vunpack.c.l.b16 %v742
        %v946 = vpack.c.b16 %v849, %v848
        %v947 = vpack.c.b16 %v851, %v850
        %v948 = vpack.c.b16 %v853, %v852
        %v949 = vpack.c.b16 %v855, %v854
        %v950 = vpack.c.b16 %v857, %v856
        %v951 = vpack.c.b16 %v859, %v858
        %v952 = vpack.c.b16 %v861, %v860
        %v953 = vpack.c.b16 %v863, %v862
        %v954 = vpack.c.b16 %v865, %v864
        %v955 = vpack.c.b16 %v867, %v866
        %v956 = vpack.c.b16 %v869, %v868
        %v957 = vpack.c.b16 %v871, %v870
        %v958 = vpack.c.b16 %v873, %v872
        %v959 = vpack.c.b16 %v875, %v874
        %v960 = vpack.c.b16 %v877, %v876
        %v961 = vpack.c.b16 %v879, %v878
        %v962 = vpack.c.b16 %v881, %v880
        %v963 = vpack.c.b16 %v883, %v882
        %v964 = vpack.c.b16 %v885, %v884
        %v965 = vpack.c.b16 %v887, %v886
        %v966 = vpack.c.b16 %v889, %v888
        %v967 = vpack.c.b16 %v891, %v890
        %v968 = vpack.c.b16 %v893, %v892
        %v969 = vpack.c.b16 %v895, %v894
        %v970 = vpack.c.b16 %v897, %v896
        %v971 = vpack.c.b16 %v899, %v898
        %v972 = vpack.c.b16 %v901, %v900
        %v973 = vpack.c.b16 %v903, %v902
        %v974 = vpack.c.b16 %v905, %v904
        %v975 = vpack.c.b16 %v907, %v906
        %v976 = vpack.c.b16 %v909, %v908
        %v977 = vpack.c.b16 %v911, %v910
        %v978 = vpack.c.b16 %v913, %v912
        %v979 = vpack.c.b16 %v915, %v914
        %v980 = vpack.c.b16 %v917, %v916
        %v981 = vpack.c.b16 %v919, %v918
        %v982 = vpack.c.b16 %v921, %v920
        %v983 = vpack.c.b16 %v923, %v922
        %v984 = vpack.c.b16 %v925, %v924
        %v985 = vpack.c.b16 %v927, %v926
        %v986 = vpack.c.b16 %v929, %v928
        %v987 = vpack.c.b16 %v931, %v930
        %v988 = vpack.c.b16 %v933, %v932
        %v989 = vpack.c.b16 %v935, %v934
        %v990 = vpack.c.b16 %v937, %v936
        %v991 = vpack.c.b16 %v939, %v938
        %v992 = vpack.c.b16 %v941, %v940
        %v993 = vpack.c.b16 %v943, %v942
        %v994 = vpack.c.b16 %v945, %v944
        %vm1044 = vcmask 130048
        %v1046 = vsel %vm1044, %v539, 0
        %v1049 = vsel %vm1044, %v546, 0
        %v1052 = vsel %vm1044, %v553, 0
        %v1055 = vsel %vm1044, %v560, 0
        %v1058 = vsel %vm1044, %v567, 0
        %v1061 = vsel %vm1044, %v574, 0
        %v1064 = vsel %vm1044, %v581, 0
        %v1067 = vsel %vm1044, %v588, 0
        %v1070 = vsel %vm1044, %v595, 0
        %v1073 = vsel %vm1044, %v602, 0
        %v1076 = vsel %vm1044, %v609, 0
        %v1079 = vsel %vm1044, %v616, 0
        %v1082 = vsel %vm1044, %v623, 0
        %v1085 = vsel %vm1044, %v630, 0
        %v1088 = vsel %vm1044, %v637, 0
        %v1091 = vsel %vm1044, %v644, 0
        %1093 = vmatprep.subr.bf16.mxu0 0
        %1094 = vmatpush1.bf16.msra.mxu0 %v953
        %1095 = vmatprep.subr.bf16.mxu0 0
        %1096 = vmatpush1.bf16.msra.mxu0 %v952
        %1097 = vmatprep.subr.bf16.mxu0 0
        %1098 = vmatpush1.bf16.msra.mxu0 %v951
        %1099 = vmatprep.subr.bf16.mxu0 0
        %1100 = vmatpush1.bf16.msra.mxu0 %v950
        %1101 = vmatprep.subr.bf16.mxu0 0
        %1102 = vmatpush1.bf16.msra.mxu0 %v949
        %1103 = vmatprep.subr.bf16.mxu0 0
        %1104 = vmatpush1.bf16.msra.mxu0 %v948
        %1105 = vmatprep.subr.bf16.mxu0 0
        %1106 = vmatpush1.bf16.msra.mxu0 %v947
        %1107 = vmatprep.subr.bf16.mxu0 0
        %1108 = vmatpush1.bf16.msra.mxu0 %v946
        %1109 = vmatprep.subr.bf16.mxu0 0
        %1110 = vmatpush2.bf16.msra.mxu0 %v961
        %1111 = vmatprep.subr.bf16.mxu0 0
        %1112 = vmatpush2.bf16.msra.mxu0 %v960
        %1113 = vmatprep.subr.bf16.mxu0 0
        %1114 = vmatpush2.bf16.msra.mxu0 %v959
        %1115 = vmatprep.subr.bf16.mxu0 0
        %1116 = vmatpush2.bf16.msra.mxu0 %v958
        %1117 = vmatprep.subr.bf16.mxu0 0
        %1118 = vmatpush2.bf16.msra.mxu0 %v957
        %1119 = vmatprep.subr.bf16.mxu0 0
        %1120 = vmatpush2.bf16.msra.mxu0 %v956
        %1121 = vmatprep.subr.bf16.mxu0 0
        %1122 = vmatpush2.bf16.msra.mxu0 %v955
        %1123 = vmatprep.subr.bf16.mxu0 0
        %1124 = vmatpush2.bf16.msra.mxu0 %v954
        %1125 = vmatprep.mubr.bf16.mxu0 %v534
        %1126 = vmatmul.mubr.bf16.gmra.mxu0 %v533
        %v1127 = vpop.f32.mrf.mxu0
        %v1128 = vadd.f32 %v748, %v1127
        %v1129 = vpop.f32.mrf.mxu0
        %v1130 = vpop.f32.mrf.mxu0
        %v1131 = vadd.f32 %v748, %v1130
        %v1132 = vpop.f32.mrf.mxu0
        %1133 = vmatprep.mubr.bf16.mxu0 %v541
        %1134 = vmatmul.mubr.bf16.gmra.mxu0 %v540
        %v1135 = vpop.f32.mrf.mxu0
        %v1136 = vadd.f32 %v748, %v1135
        %v1137 = vpop.f32.mrf.mxu0
        %v1138 = vpop.f32.mrf.mxu0
        %v1139 = vadd.f32 %v748, %v1138
        %v1140 = vpop.f32.mrf.mxu0
        %1141 = vmatprep.mubr.bf16.mxu0 %v548
        %1142 = vmatmul.mubr.bf16.gmra.mxu0 %v547
        %v1143 = vpop.f32.mrf.mxu0
        %v1144 = vadd.f32 %v748, %v1143
        %v1145 = vpop.f32.mrf.mxu0
        %v1146 = vpop.f32.mrf.mxu0
        %v1147 = vadd.f32 %v748, %v1146
        %v1148 = vpop.f32.mrf.mxu0
        %1149 = vmatprep.mubr.bf16.mxu0 %v555
        %1150 = vmatmul.mubr.bf16.gmra.mxu0 %v554
        %v1151 = vpop.f32.mrf.mxu0
        %v1152 = vadd.f32 %v748, %v1151
        %v1153 = vpop.f32.mrf.mxu0
        %v1154 = vpop.f32.mrf.mxu0
        %v1155 = vadd.f32 %v748, %v1154
        %v1156 = vpop.f32.mrf.mxu0
        %1157 = vmatprep.mubr.bf16.mxu0 %v562
        %1158 = vmatmul.mubr.bf16.gmra.mxu0 %v561
        %v1159 = vpop.f32.mrf.mxu0
        %v1160 = vadd.f32 %v748, %v1159
        %v1161 = vpop.f32.mrf.mxu0
        %v1162 = vpop.f32.mrf.mxu0
        %v1163 = vadd.f32 %v748, %v1162
        %v1164 = vpop.f32.mrf.mxu0
        %1165 = vmatprep.mubr.bf16.mxu0 %v569
        %1166 = vmatmul.mubr.bf16.gmra.mxu0 %v568
        %v1167 = vpop.f32.mrf.mxu0
        %v1168 = vadd.f32 %v748, %v1167
        %v1169 = vpop.f32.mrf.mxu0
        %v1170 = vpop.f32.mrf.mxu0
        %v1171 = vadd.f32 %v748, %v1170
        %v1172 = vpop.f32.mrf.mxu0
        %1173 = vmatprep.mubr.bf16.mxu0 %v576
        %1174 = vmatmul.mubr.bf16.gmra.mxu0 %v575
        %v1175 = vpop.f32.mrf.mxu0
        %v1176 = vadd.f32 %v748, %v1175
        %v1177 = vpop.f32.mrf.mxu0
        %v1178 = vpop.f32.mrf.mxu0
        %v1179 = vadd.f32 %v748, %v1178
        %v1180 = vpop.f32.mrf.mxu0
        %1181 = vmatprep.mubr.bf16.mxu0 %v583
        %1182 = vmatmul.mubr.bf16.gmra.mxu0 %v582
        %v1183 = vpop.f32.mrf.mxu0
        %v1184 = vadd.f32 %v748, %v1183
        %v1185 = vpop.f32.mrf.mxu0
        %v1186 = vpop.f32.mrf.mxu0
        %v1187 = vadd.f32 %v748, %v1186
        %v1188 = vpop.f32.mrf.mxu0
        %1189 = vmatprep.mubr.bf16.mxu0 %v590
        %1190 = vmatmul.mubr.bf16.gmra.mxu0 %v589
        %v1191 = vpop.f32.mrf.mxu0
        %v1192 = vadd.f32 %v748, %v1191
        %v1193 = vpop.f32.mrf.mxu0
        %v1194 = vpop.f32.mrf.mxu0
        %v1195 = vadd.f32 %v748, %v1194
        %v1196 = vpop.f32.mrf.mxu0
        %1197 = vmatprep.mubr.bf16.mxu0 %v597
        %1198 = vmatmul.mubr.bf16.gmra.mxu0 %v596
        %v1199 = vpop.f32.mrf.mxu0
        %v1200 = vadd.f32 %v748, %v1199
        %v1201 = vpop.f32.mrf.mxu0
        %v1202 = vpop.f32.mrf.mxu0
        %v1203 = vadd.f32 %v748, %v1202
        %v1204 = vpop.f32.mrf.mxu0
        %1205 = vmatprep.mubr.bf16.mxu0 %v604
        %1206 = vmatmul.mubr.bf16.gmra.mxu0 %v603
        %v1207 = vpop.f32.mrf.mxu0
        %v1208 = vadd.f32 %v748, %v1207
        %v1209 = vpop.f32.mrf.mxu0
        %v1210 = vpop.f32.mrf.mxu0
        %v1211 = vadd.f32 %v748, %v1210
        %v1212 = vpop.f32.mrf.mxu0
        %1213 = vmatprep.mubr.bf16.mxu0 %v611
        %1214 = vmatmul.mubr.bf16.gmra.mxu0 %v610
        %v1215 = vpop.f32.mrf.mxu0
        %v1216 = vadd.f32 %v748, %v1215
        %v1217 = vpop.f32.mrf.mxu0
        %v1218 = vpop.f32.mrf.mxu0
        %v1219 = vadd.f32 %v748, %v1218
        %v1220 = vpop.f32.mrf.mxu0
        %1221 = vmatprep.mubr.bf16.mxu0 %v618
        %1222 = vmatmul.mubr.bf16.gmra.mxu0 %v617
        %v1223 = vpop.f32.mrf.mxu0
        %v1224 = vadd.f32 %v748, %v1223
        %v1225 = vpop.f32.mrf.mxu0
        %v1226 = vpop.f32.mrf.mxu0
        %v1227 = vadd.f32 %v748, %v1226
        %v1228 = vpop.f32.mrf.mxu0
        %1229 = vmatprep.mubr.bf16.mxu0 %v625
        %1230 = vmatmul.mubr.bf16.gmra.mxu0 %v624
        %v1231 = vpop.f32.mrf.mxu0
        %v1232 = vadd.f32 %v748, %v1231
        %v1233 = vpop.f32.mrf.mxu0
        %v1234 = vpop.f32.mrf.mxu0
        %v1235 = vadd.f32 %v748, %v1234
        %v1236 = vpop.f32.mrf.mxu0
        %1237 = vmatprep.mubr.bf16.mxu0 %v632
        %1238 = vmatmul.mubr.bf16.gmra.mxu0 %v631
        %v1239 = vpop.f32.mrf.mxu0
        %v1240 = vadd.f32 %v748, %v1239
        %v1241 = vpop.f32.mrf.mxu0
        %v1242 = vpop.f32.mrf.mxu0
        %v1243 = vadd.f32 %v748, %v1242
        %v1244 = vpop.f32.mrf.mxu0
        %1245 = vmatprep.mubr.bf16.mxu0 %v639
        %1246 = vmatmul.mubr.bf16.gmra.mxu0 %v638
        %v1247 = vpop.f32.mrf.mxu0
        %v1248 = vadd.f32 %v748, %v1247
        %v1249 = vpop.f32.mrf.mxu0
        %v1250 = vpop.f32.mrf.mxu0
        %v1251 = vadd.f32 %v748, %v1250
        %v1252 = vpop.f32.mrf.mxu0
        %1253 = vdwg.mxu0
        %1254 = vmatprep.subr.bf16.mxu0 0
        %1255 = vmatpush1.bf16.msra.mxu0 %v969
        %1256 = vmatprep.subr.bf16.mxu0 0
        %1257 = vmatpush1.bf16.msra.mxu0 %v968
        %1258 = vmatprep.subr.bf16.mxu0 0
        %1259 = vmatpush1.bf16.msra.mxu0 %v967
        %1260 = vmatprep.subr.bf16.mxu0 0
        %1261 = vmatpush1.bf16.msra.mxu0 %v966
        %1262 = vmatprep.subr.bf16.mxu0 0
        %1263 = vmatpush1.bf16.msra.mxu0 %v965
        %1264 = vmatprep.subr.bf16.mxu0 0
        %1265 = vmatpush1.bf16.msra.mxu0 %v964
        %1266 = vmatprep.subr.bf16.mxu0 0
        %1267 = vmatpush1.bf16.msra.mxu0 %v963
        %1268 = vmatprep.subr.bf16.mxu0 0
        %1269 = vmatpush1.bf16.msra.mxu0 %v962
        %1270 = vmatprep.subr.bf16.mxu0 0
        %1271 = vmatpush2.bf16.msra.mxu0 %v977
        %1272 = vmatprep.subr.bf16.mxu0 0
        %1273 = vmatpush2.bf16.msra.mxu0 %v976
        %1274 = vmatprep.subr.bf16.mxu0 0
        %1275 = vmatpush2.bf16.msra.mxu0 %v975
        %1276 = vmatprep.subr.bf16.mxu0 0
        %1277 = vmatpush2.bf16.msra.mxu0 %v974
        %1278 = vmatprep.subr.bf16.mxu0 0
        %1279 = vmatpush2.bf16.msra.mxu0 %v973
        %1280 = vmatprep.subr.bf16.mxu0 0
        %1281 = vmatpush2.bf16.msra.mxu0 %v972
        %1282 = vmatprep.subr.bf16.mxu0 0
        %1283 = vmatpush2.bf16.msra.mxu0 %v971
        %1284 = vmatprep.subr.bf16.mxu0 0
        %1285 = vmatpush2.bf16.msra.mxu0 %v970
        %1286 = vmatprep.mubr.bf16.mxu0 %v536
        %1287 = vmatmul.mubr.bf16.gmra.mxu0 %v535
        %v1288 = vpop.f32.mrf.mxu0
        %v1289 = vadd.f32 %v1128, %v1288
        %v1290 = vpop.f32.mrf.mxu0
        %v1291 = vpop.f32.mrf.mxu0
        %v1292 = vadd.f32 %v1131, %v1291
        %v1293 = vpop.f32.mrf.mxu0
        %1294 = vmatprep.mubr.bf16.mxu0 %v543
        %1295 = vmatmul.mubr.bf16.gmra.mxu0 %v542
        %v1296 = vpop.f32.mrf.mxu0
        %v1297 = vadd.f32 %v1136, %v1296
        %v1298 = vpop.f32.mrf.mxu0
        %v1299 = vpop.f32.mrf.mxu0
        %v1300 = vadd.f32 %v1139, %v1299
        %v1301 = vpop.f32.mrf.mxu0
        %1302 = vmatprep.mubr.bf16.mxu0 %v550
        %1303 = vmatmul.mubr.bf16.gmra.mxu0 %v549
        %v1304 = vpop.f32.mrf.mxu0
        %v1305 = vadd.f32 %v1144, %v1304
        %v1306 = vpop.f32.mrf.mxu0
        %v1307 = vpop.f32.mrf.mxu0
        %v1308 = vadd.f32 %v1147, %v1307
        %v1309 = vpop.f32.mrf.mxu0
        %1310 = vmatprep.mubr.bf16.mxu0 %v557
        %1311 = vmatmul.mubr.bf16.gmra.mxu0 %v556
        %v1312 = vpop.f32.mrf.mxu0
        %v1313 = vadd.f32 %v1152, %v1312
        %v1314 = vpop.f32.mrf.mxu0
        %v1315 = vpop.f32.mrf.mxu0
        %v1316 = vadd.f32 %v1155, %v1315
        %v1317 = vpop.f32.mrf.mxu0
        %1318 = vmatprep.mubr.bf16.mxu0 %v564
        %1319 = vmatmul.mubr.bf16.gmra.mxu0 %v563
        %v1320 = vpop.f32.mrf.mxu0
        %v1321 = vadd.f32 %v1160, %v1320
        %v1322 = vpop.f32.mrf.mxu0
        %v1323 = vpop.f32.mrf.mxu0
        %v1324 = vadd.f32 %v1163, %v1323
        %v1325 = vpop.f32.mrf.mxu0
        %1326 = vmatprep.mubr.bf16.mxu0 %v571
        %1327 = vmatmul.mubr.bf16.gmra.mxu0 %v570
        %v1328 = vpop.f32.mrf.mxu0
        %v1329 = vadd.f32 %v1168, %v1328
        %v1330 = vpop.f32.mrf.mxu0
        %v1331 = vpop.f32.mrf.mxu0
        %v1332 = vadd.f32 %v1171, %v1331
        %v1333 = vpop.f32.mrf.mxu0
        %1334 = vmatprep.mubr.bf16.mxu0 %v578
        %1335 = vmatmul.mubr.bf16.gmra.mxu0 %v577
        %v1336 = vpop.f32.mrf.mxu0
        %v1337 = vadd.f32 %v1176, %v1336
        %v1338 = vpop.f32.mrf.mxu0
        %v1339 = vpop.f32.mrf.mxu0
        %v1340 = vadd.f32 %v1179, %v1339
        %v1341 = vpop.f32.mrf.mxu0
        %1342 = vmatprep.mubr.bf16.mxu0 %v585
        %1343 = vmatmul.mubr.bf16.gmra.mxu0 %v584
        %v1344 = vpop.f32.mrf.mxu0
        %v1345 = vadd.f32 %v1184, %v1344
        %v1346 = vpop.f32.mrf.mxu0
        %v1347 = vpop.f32.mrf.mxu0
        %v1348 = vadd.f32 %v1187, %v1347
        %v1349 = vpop.f32.mrf.mxu0
        %1350 = vmatprep.mubr.bf16.mxu0 %v592
        %1351 = vmatmul.mubr.bf16.gmra.mxu0 %v591
        %v1352 = vpop.f32.mrf.mxu0
        %v1353 = vadd.f32 %v1192, %v1352
        %v1354 = vpop.f32.mrf.mxu0
        %v1355 = vpop.f32.mrf.mxu0
        %v1356 = vadd.f32 %v1195, %v1355
        %v1357 = vpop.f32.mrf.mxu0
        %1358 = vmatprep.mubr.bf16.mxu0 %v599
        %1359 = vmatmul.mubr.bf16.gmra.mxu0 %v598
        %v1360 = vpop.f32.mrf.mxu0
        %v1361 = vadd.f32 %v1200, %v1360
        %v1362 = vpop.f32.mrf.mxu0
        %v1363 = vpop.f32.mrf.mxu0
        %v1364 = vadd.f32 %v1203, %v1363
        %v1365 = vpop.f32.mrf.mxu0
        %1366 = vmatprep.mubr.bf16.mxu0 %v606
        %1367 = vmatmul.mubr.bf16.gmra.mxu0 %v605
        %v1368 = vpop.f32.mrf.mxu0
        %v1369 = vadd.f32 %v1208, %v1368
        %v1370 = vpop.f32.mrf.mxu0
        %v1371 = vpop.f32.mrf.mxu0
        %v1372 = vadd.f32 %v1211, %v1371
        %v1373 = vpop.f32.mrf.mxu0
        %1374 = vmatprep.mubr.bf16.mxu0 %v613
        %1375 = vmatmul.mubr.bf16.gmra.mxu0 %v612
        %v1376 = vpop.f32.mrf.mxu0
        %v1377 = vadd.f32 %v1216, %v1376
        %v1378 = vpop.f32.mrf.mxu0
        %v1379 = vpop.f32.mrf.mxu0
        %v1380 = vadd.f32 %v1219, %v1379
        %v1381 = vpop.f32.mrf.mxu0
        %1382 = vmatprep.mubr.bf16.mxu0 %v620
        %1383 = vmatmul.mubr.bf16.gmra.mxu0 %v619
        %v1384 = vpop.f32.mrf.mxu0
        %v1385 = vadd.f32 %v1224, %v1384
        %v1386 = vpop.f32.mrf.mxu0
        %v1387 = vpop.f32.mrf.mxu0
        %v1388 = vadd.f32 %v1227, %v1387
        %v1389 = vpop.f32.mrf.mxu0
        %1390 = vmatprep.mubr.bf16.mxu0 %v627
        %1391 = vmatmul.mubr.bf16.gmra.mxu0 %v626
        %v1392 = vpop.f32.mrf.mxu0
        %v1393 = vadd.f32 %v1232, %v1392
        %v1394 = vpop.f32.mrf.mxu0
        %v1395 = vpop.f32.mrf.mxu0
        %v1396 = vadd.f32 %v1235, %v1395
        %v1397 = vpop.f32.mrf.mxu0
        %1398 = vmatprep.mubr.bf16.mxu0 %v634
        %1399 = vmatmul.mubr.bf16.gmra.mxu0 %v633
        %v1400 = vpop.f32.mrf.mxu0
        %v1401 = vadd.f32 %v1240, %v1400
        %v1402 = vpop.f32.mrf.mxu0
        %v1403 = vpop.f32.mrf.mxu0
        %v1404 = vadd.f32 %v1243, %v1403
        %v1405 = vpop.f32.mrf.mxu0
        %1406 = vmatprep.mubr.bf16.mxu0 %v641
        %1407 = vmatmul.mubr.bf16.gmra.mxu0 %v640
        %v1408 = vpop.f32.mrf.mxu0
        %v1409 = vadd.f32 %v1248, %v1408
        %v1410 = vpop.f32.mrf.mxu0
        %v1411 = vpop.f32.mrf.mxu0
        %v1412 = vadd.f32 %v1251, %v1411
        %v1413 = vpop.f32.mrf.mxu0
        %1414 = vdwg.mxu0
        %1415 = vmatprep.subr.bf16.mxu0 0
        %1416 = vmatpush1.bf16.msra.mxu0 %v985
        %1417 = vmatprep.subr.bf16.mxu0 0
        %1418 = vmatpush1.bf16.msra.mxu0 %v984
        %1419 = vmatprep.subr.bf16.mxu0 0
        %1420 = vmatpush1.bf16.msra.mxu0 %v983
        %1421 = vmatprep.subr.bf16.mxu0 0
        %1422 = vmatpush1.bf16.msra.mxu0 %v982
        %1423 = vmatprep.subr.bf16.mxu0 0
        %1424 = vmatpush1.bf16.msra.mxu0 %v981
        %1425 = vmatprep.subr.bf16.mxu0 0
        %1426 = vmatpush1.bf16.msra.mxu0 %v980
        %1427 = vmatprep.subr.bf16.mxu0 0
        %1428 = vmatpush1.bf16.msra.mxu0 %v979
        %1429 = vmatprep.subr.bf16.mxu0 0
        %1430 = vmatpush1.bf16.msra.mxu0 %v978
        %1431 = vmatprep.subr.bf16.mxu0 0
        %1432 = vmatpush2.bf16.msra.mxu0 %v993
        %1433 = vmatprep.subr.bf16.mxu0 0
        %1434 = vmatpush2.bf16.msra.mxu0 %v992
        %1435 = vmatprep.subr.bf16.mxu0 0
        %1436 = vmatpush2.bf16.msra.mxu0 %v991
        %1437 = vmatprep.subr.bf16.mxu0 0
        %1438 = vmatpush2.bf16.msra.mxu0 %v990
        %1439 = vmatprep.subr.bf16.mxu0 0
        %1440 = vmatpush2.bf16.msra.mxu0 %v989
        %1441 = vmatprep.subr.bf16.mxu0 0
        %1442 = vmatpush2.bf16.msra.mxu0 %v988
        %1443 = vmatprep.subr.bf16.mxu0 0
        %1444 = vmatpush2.bf16.msra.mxu0 %v987
        %1445 = vmatprep.subr.bf16.mxu0 0
        %1446 = vmatpush2.bf16.msra.mxu0 %v986
        %1447 = vmatprep.mubr.bf16.mxu0 %v538
        %1448 = vmatmul.mubr.bf16.gmra.mxu0 %v537
        %v1449 = vpop.f32.mrf.mxu0
        %v1450 = vadd.f32 %v1289, %v1449
        %v1451 = vpop.f32.mrf.mxu0
        %v1452 = vpop.f32.mrf.mxu0
        %v1453 = vadd.f32 %v1292, %v1452
        %v1454 = vpop.f32.mrf.mxu0
        %1455 = vmatprep.mubr.bf16.mxu0 %v545
        %1456 = vmatmul.mubr.bf16.gmra.mxu0 %v544
        %v1457 = vpop.f32.mrf.mxu0
        %v1458 = vadd.f32 %v1297, %v1457
        %v1459 = vpop.f32.mrf.mxu0
        %v1460 = vpop.f32.mrf.mxu0
        %v1461 = vadd.f32 %v1300, %v1460
        %v1462 = vpop.f32.mrf.mxu0
        %1463 = vmatprep.mubr.bf16.mxu0 %v552
        %1464 = vmatmul.mubr.bf16.gmra.mxu0 %v551
        %v1465 = vpop.f32.mrf.mxu0
        %v1466 = vadd.f32 %v1305, %v1465
        %v1467 = vpop.f32.mrf.mxu0
        %v1468 = vpop.f32.mrf.mxu0
        %v1469 = vadd.f32 %v1308, %v1468
        %v1470 = vpop.f32.mrf.mxu0
        %1471 = vmatprep.mubr.bf16.mxu0 %v559
        %1472 = vmatmul.mubr.bf16.gmra.mxu0 %v558
        %v1473 = vpop.f32.mrf.mxu0
        %v1474 = vadd.f32 %v1313, %v1473
        %v1475 = vpop.f32.mrf.mxu0
        %v1476 = vpop.f32.mrf.mxu0
        %v1477 = vadd.f32 %v1316, %v1476
        %v1478 = vpop.f32.mrf.mxu0
        %1479 = vmatprep.mubr.bf16.mxu0 %v566
        %1480 = vmatmul.mubr.bf16.gmra.mxu0 %v565
        %v1481 = vpop.f32.mrf.mxu0
        %v1482 = vadd.f32 %v1321, %v1481
        %v1483 = vpop.f32.mrf.mxu0
        %v1484 = vpop.f32.mrf.mxu0
        %v1485 = vadd.f32 %v1324, %v1484
        %v1486 = vpop.f32.mrf.mxu0
        %1487 = vmatprep.mubr.bf16.mxu0 %v573
        %1488 = vmatmul.mubr.bf16.gmra.mxu0 %v572
        %v1489 = vpop.f32.mrf.mxu0
        %v1490 = vadd.f32 %v1329, %v1489
        %v1491 = vpop.f32.mrf.mxu0
        %v1492 = vpop.f32.mrf.mxu0
        %v1493 = vadd.f32 %v1332, %v1492
        %v1494 = vpop.f32.mrf.mxu0
        %1495 = vmatprep.mubr.bf16.mxu0 %v580
        %1496 = vmatmul.mubr.bf16.gmra.mxu0 %v579
        %v1497 = vpop.f32.mrf.mxu0
        %v1498 = vadd.f32 %v1337, %v1497
        %v1499 = vpop.f32.mrf.mxu0
        %v1500 = vpop.f32.mrf.mxu0
        %v1501 = vadd.f32 %v1340, %v1500
        %v1502 = vpop.f32.mrf.mxu0
        %1503 = vmatprep.mubr.bf16.mxu0 %v587
        %1504 = vmatmul.mubr.bf16.gmra.mxu0 %v586
        %v1505 = vpop.f32.mrf.mxu0
        %v1506 = vadd.f32 %v1345, %v1505
        %v1507 = vpop.f32.mrf.mxu0
        %v1508 = vpop.f32.mrf.mxu0
        %v1509 = vadd.f32 %v1348, %v1508
        %v1510 = vpop.f32.mrf.mxu0
        %1511 = vmatprep.mubr.bf16.mxu0 %v594
        %1512 = vmatmul.mubr.bf16.gmra.mxu0 %v593
        %v1513 = vpop.f32.mrf.mxu0
        %v1514 = vadd.f32 %v1353, %v1513
        %v1515 = vpop.f32.mrf.mxu0
        %v1516 = vpop.f32.mrf.mxu0
        %v1517 = vadd.f32 %v1356, %v1516
        %v1518 = vpop.f32.mrf.mxu0
        %1519 = vmatprep.mubr.bf16.mxu0 %v601
        %1520 = vmatmul.mubr.bf16.gmra.mxu0 %v600
        %v1521 = vpop.f32.mrf.mxu0
        %v1522 = vadd.f32 %v1361, %v1521
        %v1523 = vpop.f32.mrf.mxu0
        %v1524 = vpop.f32.mrf.mxu0
        %v1525 = vadd.f32 %v1364, %v1524
        %v1526 = vpop.f32.mrf.mxu0
        %1527 = vmatprep.mubr.bf16.mxu0 %v608
        %1528 = vmatmul.mubr.bf16.gmra.mxu0 %v607
        %v1529 = vpop.f32.mrf.mxu0
        %v1530 = vadd.f32 %v1369, %v1529
        %v1531 = vpop.f32.mrf.mxu0
        %v1532 = vpop.f32.mrf.mxu0
        %v1533 = vadd.f32 %v1372, %v1532
        %v1534 = vpop.f32.mrf.mxu0
        %1535 = vmatprep.mubr.bf16.mxu0 %v615
        %1536 = vmatmul.mubr.bf16.gmra.mxu0 %v614
        %v1537 = vpop.f32.mrf.mxu0
        %v1538 = vadd.f32 %v1377, %v1537
        %v1539 = vpop.f32.mrf.mxu0
        %v1540 = vpop.f32.mrf.mxu0
        %v1541 = vadd.f32 %v1380, %v1540
        %v1542 = vpop.f32.mrf.mxu0
        %1543 = vmatprep.mubr.bf16.mxu0 %v622
        %1544 = vmatmul.mubr.bf16.gmra.mxu0 %v621
        %v1545 = vpop.f32.mrf.mxu0
        %v1546 = vadd.f32 %v1385, %v1545
        %v1547 = vpop.f32.mrf.mxu0
        %v1548 = vpop.f32.mrf.mxu0
        %v1549 = vadd.f32 %v1388, %v1548
        %v1550 = vpop.f32.mrf.mxu0
        %1551 = vmatprep.mubr.bf16.mxu0 %v629
        %1552 = vmatmul.mubr.bf16.gmra.mxu0 %v628
        %v1553 = vpop.f32.mrf.mxu0
        %v1554 = vadd.f32 %v1393, %v1553
        %v1555 = vpop.f32.mrf.mxu0
        %v1556 = vpop.f32.mrf.mxu0
        %v1557 = vadd.f32 %v1396, %v1556
        %v1558 = vpop.f32.mrf.mxu0
        %1559 = vmatprep.mubr.bf16.mxu0 %v636
        %1560 = vmatmul.mubr.bf16.gmra.mxu0 %v635
        %v1561 = vpop.f32.mrf.mxu0
        %v1562 = vadd.f32 %v1401, %v1561
        %v1563 = vpop.f32.mrf.mxu0
        %v1564 = vpop.f32.mrf.mxu0
        %v1565 = vadd.f32 %v1404, %v1564
        %v1566 = vpop.f32.mrf.mxu0
        %1567 = vmatprep.mubr.bf16.mxu0 %v643
        %1568 = vmatmul.mubr.bf16.gmra.mxu0 %v642
        %v1569 = vpop.f32.mrf.mxu0
        %v1570 = vadd.f32 %v1409, %v1569
        %v1571 = vpop.f32.mrf.mxu0
        %v1572 = vpop.f32.mrf.mxu0
        %v1573 = vadd.f32 %v1412, %v1572
        %v1574 = vpop.f32.mrf.mxu0
        %1575 = vdwg.mxu0
        %1576 = vmatprep.subr.bf16.mxu0 0
        %1577 = vmatpush1.bf16.msra.mxu0 0
        %1578 = vmatprep.subr.bf16.mxu0 0
        %1579 = vmatpush1.bf16.msra.mxu0 0
        %1580 = vmatprep.subr.bf16.mxu0 0
        %1581 = vmatpush1.bf16.msra.mxu0 0
        %1582 = vmatprep.subr.bf16.mxu0 0
        %1583 = vmatpush1.bf16.msra.mxu0 0
        %1584 = vmatprep.subr.bf16.mxu0 0
        %1585 = vmatpush1.bf16.msra.mxu0 0
        %1586 = vmatprep.subr.bf16.mxu0 0
        %1587 = vmatpush1.bf16.msra.mxu0 0
        %1588 = vmatprep.subr.bf16.mxu0 0
        %1589 = vmatpush1.bf16.msra.mxu0 0
        %1590 = vmatprep.subr.bf16.mxu0 0
        %1591 = vmatpush1.bf16.msra.mxu0 %v994
        %1592 = vmatprep.subr.bf16.mxu0 0
        %1593 = vmatpush2.bf16.msra.mxu0 0
        %1594 = vmatprep.subr.bf16.mxu0 0
        %1595 = vmatpush2.bf16.msra.mxu0 0
        %1596 = vmatprep.subr.bf16.mxu0 0
        %1597 = vmatpush2.bf16.msra.mxu0 0
        %1598 = vmatprep.subr.bf16.mxu0 0
        %1599 = vmatpush2.bf16.msra.mxu0 0
        %1600 = vmatprep.subr.bf16.mxu0 0
        %1601 = vmatpush2.bf16.msra.mxu0 0
        %1602 = vmatprep.subr.bf16.mxu0 0
        %1603 = vmatpush2.bf16.msra.mxu0 0
        %1604 = vmatprep.subr.bf16.mxu0 0
        %1605 = vmatpush2.bf16.msra.mxu0 0
        %1606 = vmatprep.subr.bf16.mxu0 0
        %1607 = vmatpush2.bf16.msra.mxu0 0
        %1608 = vmatprep.mubr.bf16.mxu0 0
        %1609 = vmatmul.mubr.bf16.gmra.mxu0 %v1046
        %v1610 = vpop.f32.mrf.mxu0
        %v1611 = vadd.f32 %v1450, %v1610
        %v1612 = vpop.f32.mrf.mxu0
        %v1613 = vpop.f32.mrf.mxu0
        %v1614 = vadd.f32 %v1453, %v1613
        %v1615 = vpop.f32.mrf.mxu0
        %1616 = vmatprep.mubr.bf16.mxu0 0
        %1617 = vmatmul.mubr.bf16.gmra.mxu0 %v1049
        %v1618 = vpop.f32.mrf.mxu0
        %v1619 = vadd.f32 %v1458, %v1618
        %v1620 = vpop.f32.mrf.mxu0
        %v1621 = vpop.f32.mrf.mxu0
        %v1622 = vadd.f32 %v1461, %v1621
        %v1623 = vpop.f32.mrf.mxu0
        %1624 = vmatprep.mubr.bf16.mxu0 0
        %1625 = vmatmul.mubr.bf16.gmra.mxu0 %v1052
        %v1626 = vpop.f32.mrf.mxu0
        %v1627 = vadd.f32 %v1466, %v1626
        %v1628 = vpop.f32.mrf.mxu0
        %v1629 = vpop.f32.mrf.mxu0
        %v1630 = vadd.f32 %v1469, %v1629
        %v1631 = vpop.f32.mrf.mxu0
        %1632 = vmatprep.mubr.bf16.mxu0 0
        %1633 = vmatmul.mubr.bf16.gmra.mxu0 %v1055
        %v1634 = vpop.f32.mrf.mxu0
        %v1635 = vadd.f32 %v1474, %v1634
        %v1636 = vpop.f32.mrf.mxu0
        %v1637 = vpop.f32.mrf.mxu0
        %v1638 = vadd.f32 %v1477, %v1637
        %v1639 = vpop.f32.mrf.mxu0
        %1640 = vmatprep.mubr.bf16.mxu0 0
        %1641 = vmatmul.mubr.bf16.gmra.mxu0 %v1058
        %v1642 = vpop.f32.mrf.mxu0
        %v1643 = vadd.f32 %v1482, %v1642
        %v1644 = vpop.f32.mrf.mxu0
        %v1645 = vpop.f32.mrf.mxu0
        %v1646 = vadd.f32 %v1485, %v1645
        %v1647 = vpop.f32.mrf.mxu0
        %1648 = vmatprep.mubr.bf16.mxu0 0
        %1649 = vmatmul.mubr.bf16.gmra.mxu0 %v1061
        %v1650 = vpop.f32.mrf.mxu0
        %v1651 = vadd.f32 %v1490, %v1650
        %v1652 = vpop.f32.mrf.mxu0
        %v1653 = vpop.f32.mrf.mxu0
        %v1654 = vadd.f32 %v1493, %v1653
        %v1655 = vpop.f32.mrf.mxu0
        %1656 = vmatprep.mubr.bf16.mxu0 0
        %1657 = vmatmul.mubr.bf16.gmra.mxu0 %v1064
        %v1658 = vpop.f32.mrf.mxu0
        %v1659 = vadd.f32 %v1498, %v1658
        %v1660 = vpop.f32.mrf.mxu0
        %v1661 = vpop.f32.mrf.mxu0
        %v1662 = vadd.f32 %v1501, %v1661
        %v1663 = vpop.f32.mrf.mxu0
        %1664 = vmatprep.mubr.bf16.mxu0 0
        %1665 = vmatmul.mubr.bf16.gmra.mxu0 %v1067
        %v1666 = vpop.f32.mrf.mxu0
        %v1667 = vadd.f32 %v1506, %v1666
        %v1668 = vpop.f32.mrf.mxu0
        %v1669 = vpop.f32.mrf.mxu0
        %v1670 = vadd.f32 %v1509, %v1669
        %v1671 = vpop.f32.mrf.mxu0
        %1672 = vmatprep.mubr.bf16.mxu0 0
        %1673 = vmatmul.mubr.bf16.gmra.mxu0 %v1070
        %v1674 = vpop.f32.mrf.mxu0
        %v1675 = vadd.f32 %v1514, %v1674
        %v1676 = vpop.f32.mrf.mxu0
        %v1677 = vpop.f32.mrf.mxu0
        %v1678 = vadd.f32 %v1517, %v1677
        %v1679 = vpop.f32.mrf.mxu0
        %1680 = vmatprep.mubr.bf16.mxu0 0
        %1681 = vmatmul.mubr.bf16.gmra.mxu0 %v1073
        %v1682 = vpop.f32.mrf.mxu0
        %v1683 = vadd.f32 %v1522, %v1682
        %v1684 = vpop.f32.mrf.mxu0
        %v1685 = vpop.f32.mrf.mxu0
        %v1686 = vadd.f32 %v1525, %v1685
        %v1687 = vpop.f32.mrf.mxu0
        %1688 = vmatprep.mubr.bf16.mxu0 0
        %1689 = vmatmul.mubr.bf16.gmra.mxu0 %v1076
        %v1690 = vpop.f32.mrf.mxu0
        %v1691 = vadd.f32 %v1530, %v1690
        %v1692 = vpop.f32.mrf.mxu0
        %v1693 = vpop.f32.mrf.mxu0
        %v1694 = vadd.f32 %v1533, %v1693
        %v1695 = vpop.f32.mrf.mxu0
        %1696 = vmatprep.mubr.bf16.mxu0 0
        %1697 = vmatmul.mubr.bf16.gmra.mxu0 %v1079
        %v1698 = vpop.f32.mrf.mxu0
        %v1699 = vadd.f32 %v1538, %v1698
        %v1700 = vpop.f32.mrf.mxu0
        %v1701 = vpop.f32.mrf.mxu0
        %v1702 = vadd.f32 %v1541, %v1701
        %v1703 = vpop.f32.mrf.mxu0
        %1704 = vmatprep.mubr.bf16.mxu0 0
        %1705 = vmatmul.mubr.bf16.gmra.mxu0 %v1082
        %v1706 = vpop.f32.mrf.mxu0
        %v1707 = vadd.f32 %v1546, %v1706
        %v1708 = vpop.f32.mrf.mxu0
        %v1709 = vpop.f32.mrf.mxu0
        %v1710 = vadd.f32 %v1549, %v1709
        %v1711 = vpop.f32.mrf.mxu0
        %1712 = vmatprep.mubr.bf16.mxu0 0
        %1713 = vmatmul.mubr.bf16.gmra.mxu0 %v1085
        %v1714 = vpop.f32.mrf.mxu0
        %v1715 = vadd.f32 %v1554, %v1714
        %v1716 = vpop.f32.mrf.mxu0
        %v1717 = vpop.f32.mrf.mxu0
        %v1718 = vadd.f32 %v1557, %v1717
        %v1719 = vpop.f32.mrf.mxu0
        %1720 = vmatprep.mubr.bf16.mxu0 0
        %1721 = vmatmul.mubr.bf16.gmra.mxu0 %v1088
        %v1722 = vpop.f32.mrf.mxu0
        %v1723 = vadd.f32 %v1562, %v1722
        %v1724 = vpop.f32.mrf.mxu0
        %v1725 = vpop.f32.mrf.mxu0
        %v1726 = vadd.f32 %v1565, %v1725
        %v1727 = vpop.f32.mrf.mxu0
        %1728 = vmatprep.mubr.bf16.mxu0 0
        %1729 = vmatmul.mubr.bf16.gmra.mxu0 %v1091
        %v1730 = vpop.f32.mrf.mxu0
        %v1731 = vadd.f32 %v1570, %v1730
        %v1732 = vpop.f32.mrf.mxu0
        %v1733 = vpop.f32.mrf.mxu0
        %v1734 = vadd.f32 %v1573, %v1733
        %v1735 = vpop.f32.mrf.mxu0
        %1736 = vdwg.mxu0
        %v1737 = vmax.f32 %v1611, 0.0
        %v1738 = vmax.f32 %v1614, 0.0
        %v1739 = vmax.f32 %v1619, 0.0
        %v1740 = vmax.f32 %v1622, 0.0
        %v1741 = vmax.f32 %v1627, 0.0
        %v1742 = vmax.f32 %v1630, 0.0
        %v1743 = vmax.f32 %v1635, 0.0
        %v1744 = vmax.f32 %v1638, 0.0
        %v1745 = vmax.f32 %v1643, 0.0
        %v1746 = vmax.f32 %v1646, 0.0
        %v1747 = vmax.f32 %v1651, 0.0
        %v1748 = vmax.f32 %v1654, 0.0
        %v1749 = vmax.f32 %v1659, 0.0
        %v1750 = vmax.f32 %v1662, 0.0
        %v1751 = vmax.f32 %v1667, 0.0
        %v1752 = vmax.f32 %v1670, 0.0
        %v1753 = vmax.f32 %v1675, 0.0
        %v1754 = vmax.f32 %v1678, 0.0
        %v1755 = vmax.f32 %v1683, 0.0
        %v1756 = vmax.f32 %v1686, 0.0
        %v1757 = vmax.f32 %v1691, 0.0
        %v1758 = vmax.f32 %v1694, 0.0
        %v1759 = vmax.f32 %v1699, 0.0
        %v1760 = vmax.f32 %v1702, 0.0
        %v1761 = vmax.f32 %v1707, 0.0
        %v1762 = vmax.f32 %v1710, 0.0
        %v1763 = vmax.f32 %v1715, 0.0
        %v1764 = vmax.f32 %v1718, 0.0
        %v1765 = vmax.f32 %v1723, 0.0
        %v1766 = vmax.f32 %v1726, 0.0
        %v1767 = vmax.f32 %v1731, 0.0
        %v1768 = vmax.f32 %v1734, 0.0
        %v1769 = vpack.c.bf16 %v1738, %v1737
        %v1770 = vpack.c.bf16 %v1740, %v1739
        %v1771 = vpack.c.bf16 %v1742, %v1741
        %v1772 = vpack.c.bf16 %v1744, %v1743
        %v1773 = vpack.c.bf16 %v1746, %v1745
        %v1774 = vpack.c.bf16 %v1748, %v1747
        %v1775 = vpack.c.bf16 %v1750, %v1749
        %v1776 = vpack.c.bf16 %v1752, %v1751
        %v1777 = vpack.c.bf16 %v1754, %v1753
        %v1778 = vpack.c.bf16 %v1756, %v1755
        %v1779 = vpack.c.bf16 %v1758, %v1757
        %v1780 = vpack.c.bf16 %v1760, %v1759
        %v1781 = vpack.c.bf16 %v1762, %v1761
        %v1782 = vpack.c.bf16 %v1764, %v1763
        %v1783 = vpack.c.bf16 %v1766, %v1765
        %v1784 = vpack.c.bf16 %v1768, %v1767
        %v1785 = vld [vmem:[%s3] sm:$0xff]
        %v1786 = vld [vmem:[%s3 + $0x8] sm:$0xff]
        %v1787 = vld [vmem:[%s3 + $0x10] sm:$0xff]
        %v1788 = vld [vmem:[%s3 + $0x18] sm:$0xff]
        %v1789 = vld [vmem:[%s3 + $0x20] sm:$0xff]
        %v1790 = vld [vmem:[%s3 + $0x28] sm:$0xff]
        %v1791 = vld [vmem:[%s3 + $0x30] sm:$0xff]
        %v1792 = vld [vmem:[%s3 + $0x38] sm:$0xff]
        %v1793 = vld [vmem:[%s3 + $0x40] sm:$0xff]
        %v1794 = vld [vmem:[%s3 + $0x48] sm:$0xff]
        %v1795 = vld [vmem:[%s3 + $0x50] sm:$0xff]
        %v1796 = vld [vmem:[%s3 + $0x58] sm:$0xff]
        %v1797 = vld [vmem:[%s3 + $0x60] sm:$0xff]
        %v1798 = vld [vmem:[%s3 + $0x68] sm:$0xff]
        %v1799 = vld [vmem:[%s3 + $0x70] sm:$0xff]
        %v1800 = vld [vmem:[%s3 + $0x78] sm:$0xff]
        %v1801 = vld [vmem:[%s4] sm:$0x3]
        %v1803 = vlaneseq
        %v1804 = vshrl.u32 %v1803, 7
        %v1805 = vsub.s32 0, %v1804
        %v1806 = vrot.slane %v1801, %v1805
        %v1807 = vlaneseq
        %v1808 = vshrl.u32 %v1807, 7
        %v1809 = vsub.s32 1, %v1808
        %v1810 = vrot.slane %v1801, %v1809
        %v1829 = vunpack.c.l.b16 %v1785
        %v1830 = vunpack.c.h.b16 %v1785
        %v1831 = vunpack.c.l.b16 %v1786
        %v1832 = vunpack.c.h.b16 %v1786
        %v1833 = vunpack.c.l.b16 %v1787
        %v1834 = vunpack.c.h.b16 %v1787
        %v1835 = vunpack.c.l.b16 %v1788
        %v1836 = vunpack.c.h.b16 %v1788
        %v1837 = vunpack.c.l.b16 %v1789
        %v1838 = vunpack.c.h.b16 %v1789
        %v1839 = vunpack.c.l.b16 %v1790
        %v1840 = vunpack.c.h.b16 %v1790
        %v1841 = vunpack.c.l.b16 %v1791
        %v1842 = vunpack.c.h.b16 %v1791
        %v1843 = vunpack.c.l.b16 %v1792
        %v1844 = vunpack.c.h.b16 %v1792
        %v1845 = vunpack.c.l.b16 %v1793
        %v1846 = vunpack.c.h.b16 %v1793
        %v1847 = vunpack.c.l.b16 %v1794
        %v1848 = vunpack.c.h.b16 %v1794
        %v1849 = vunpack.c.l.b16 %v1795
        %v1850 = vunpack.c.h.b16 %v1795
        %v1851 = vunpack.c.l.b16 %v1796
        %v1852 = vunpack.c.h.b16 %v1796
        %v1853 = vunpack.c.l.b16 %v1797
        %v1854 = vunpack.c.h.b16 %v1797
        %v1855 = vunpack.c.l.b16 %v1798
        %v1856 = vunpack.c.h.b16 %v1798
        %v1857 = vunpack.c.l.b16 %v1799
        %v1858 = vunpack.c.h.b16 %v1799
        %v1859 = vunpack.c.l.b16 %v1800
        %v1860 = vunpack.c.h.b16 %v1800
        %v1861 = vpack.c.b16 %v1831, %v1829
        %v1862 = vpack.c.b16 %v1832, %v1830
        %v1863 = vpack.c.b16 %v1835, %v1833
        %v1864 = vpack.c.b16 %v1836, %v1834
        %v1865 = vpack.c.b16 %v1839, %v1837
        %v1866 = vpack.c.b16 %v1840, %v1838
        %v1867 = vpack.c.b16 %v1843, %v1841
        %v1868 = vpack.c.b16 %v1844, %v1842
        %v1869 = vpack.c.b16 %v1847, %v1845
        %v1870 = vpack.c.b16 %v1848, %v1846
        %v1871 = vpack.c.b16 %v1851, %v1849
        %v1872 = vpack.c.b16 %v1852, %v1850
        %v1873 = vpack.c.b16 %v1855, %v1853
        %v1874 = vpack.c.b16 %v1856, %v1854
        %v1875 = vpack.c.b16 %v1859, %v1857
        %v1876 = vpack.c.b16 %v1860, %v1858
        %1893 = vmatprep.subr.bf16.mxu0 %v1876
        %1894 = vmatpush1.bf16.msra.mxu0 %v1875
        %1895 = vmatprep.subr.bf16.mxu0 %v1874
        %1896 = vmatpush1.bf16.msra.mxu0 %v1873
        %1897 = vmatprep.subr.bf16.mxu0 %v1872
        %1898 = vmatpush1.bf16.msra.mxu0 %v1871
        %1899 = vmatprep.subr.bf16.mxu0 %v1870
        %1900 = vmatpush1.bf16.msra.mxu0 %v1869
        %1901 = vmatprep.subr.bf16.mxu0 %v1868
        %1902 = vmatpush1.bf16.msra.mxu0 %v1867
        %1903 = vmatprep.subr.bf16.mxu0 %v1866
        %1904 = vmatpush1.bf16.msra.mxu0 %v1865
        %1905 = vmatprep.subr.bf16.mxu0 %v1864
        %1906 = vmatpush1.bf16.msra.mxu0 %v1863
        %1907 = vmatprep.subr.bf16.mxu0 %v1862
        %1908 = vmatpush1.bf16.msra.mxu0 %v1861
        %1909 = vmatprep.subr.bf16.mxu0 0
        %1910 = vmatpush2.bf16.msra.mxu0 0
        %1911 = vmatprep.subr.bf16.mxu0 0
        %1912 = vmatpush2.bf16.msra.mxu0 0
        %1913 = vmatprep.subr.bf16.mxu0 0
        %1914 = vmatpush2.bf16.msra.mxu0 0
        %1915 = vmatprep.subr.bf16.mxu0 0
        %1916 = vmatpush2.bf16.msra.mxu0 0
        %1917 = vmatprep.subr.bf16.mxu0 0
        %1918 = vmatpush2.bf16.msra.mxu0 0
        %1919 = vmatprep.subr.bf16.mxu0 0
        %1920 = vmatpush2.bf16.msra.mxu0 0
        %1921 = vmatprep.subr.bf16.mxu0 0
        %1922 = vmatpush2.bf16.msra.mxu0 0
        %1923 = vmatprep.subr.bf16.mxu0 0
        %1924 = vmatpush2.bf16.msra.mxu0 0
        %1925 = vmatprep.mubr.bf16.mxu0 0
        %1926 = vmatmul.mubr.bf16.gmra.mxu0 %v1769
        %v1927 = vpop.f32.mrf.mxu0
        %v1928 = vadd.f32 %v1806, %v1927
        %v1929 = vpop.f32.mrf.mxu0
        %v1930 = vadd.f32 %v1810, %v1929
        %v1931 = vpop.f32.mrf.mxu0
        %v1932 = vadd.f32 %v1806, %v1931
        %v1933 = vpop.f32.mrf.mxu0
        %v1934 = vadd.f32 %v1810, %v1933
        %1935 = vmatprep.mubr.bf16.mxu0 0
        %1936 = vmatmul.mubr.bf16.gmra.mxu0 %v1770
        %v1937 = vpop.f32.mrf.mxu0
        %v1938 = vadd.f32 %v1806, %v1937
        %v1939 = vpop.f32.mrf.mxu0
        %v1940 = vadd.f32 %v1810, %v1939
        %v1941 = vpop.f32.mrf.mxu0
        %v1942 = vadd.f32 %v1806, %v1941
        %v1943 = vpop.f32.mrf.mxu0
        %v1944 = vadd.f32 %v1810, %v1943
        %1945 = vmatprep.mubr.bf16.mxu0 0
        %1946 = vmatmul.mubr.bf16.gmra.mxu0 %v1771
        %v1947 = vpop.f32.mrf.mxu0
        %v1948 = vadd.f32 %v1806, %v1947
        %v1949 = vpop.f32.mrf.mxu0
        %v1950 = vadd.f32 %v1810, %v1949
        %v1951 = vpop.f32.mrf.mxu0
        %v1952 = vadd.f32 %v1806, %v1951
        %v1953 = vpop.f32.mrf.mxu0
        %v1954 = vadd.f32 %v1810, %v1953
        %1955 = vmatprep.mubr.bf16.mxu0 0
        %1956 = vmatmul.mubr.bf16.gmra.mxu0 %v1772
        %v1957 = vpop.f32.mrf.mxu0
        %v1958 = vadd.f32 %v1806, %v1957
        %v1959 = vpop.f32.mrf.mxu0
        %v1960 = vadd.f32 %v1810, %v1959
        %v1961 = vpop.f32.mrf.mxu0
        %v1962 = vadd.f32 %v1806, %v1961
        %v1963 = vpop.f32.mrf.mxu0
        %v1964 = vadd.f32 %v1810, %v1963
        %1965 = vmatprep.mubr.bf16.mxu0 0
        %1966 = vmatmul.mubr.bf16.gmra.mxu0 %v1773
        %v1967 = vpop.f32.mrf.mxu0
        %v1968 = vadd.f32 %v1806, %v1967
        %v1969 = vpop.f32.mrf.mxu0
        %v1970 = vadd.f32 %v1810, %v1969
        %v1971 = vpop.f32.mrf.mxu0
        %v1972 = vadd.f32 %v1806, %v1971
        %v1973 = vpop.f32.mrf.mxu0
        %v1974 = vadd.f32 %v1810, %v1973
        %1975 = vmatprep.mubr.bf16.mxu0 0
        %1976 = vmatmul.mubr.bf16.gmra.mxu0 %v1774
        %v1977 = vpop.f32.mrf.mxu0
        %v1978 = vadd.f32 %v1806, %v1977
        %v1979 = vpop.f32.mrf.mxu0
        %v1980 = vadd.f32 %v1810, %v1979
        %v1981 = vpop.f32.mrf.mxu0
        %v1982 = vadd.f32 %v1806, %v1981
        %v1983 = vpop.f32.mrf.mxu0
        %v1984 = vadd.f32 %v1810, %v1983
        %1985 = vmatprep.mubr.bf16.mxu0 0
        %1986 = vmatmul.mubr.bf16.gmra.mxu0 %v1775
        %v1987 = vpop.f32.mrf.mxu0
        %v1988 = vadd.f32 %v1806, %v1987
        %v1989 = vpop.f32.mrf.mxu0
        %v1990 = vadd.f32 %v1810, %v1989
        %v1991 = vpop.f32.mrf.mxu0
        %v1992 = vadd.f32 %v1806, %v1991
        %v1993 = vpop.f32.mrf.mxu0
        %v1994 = vadd.f32 %v1810, %v1993
        %1995 = vmatprep.mubr.bf16.mxu0 0
        %1996 = vmatmul.mubr.bf16.gmra.mxu0 %v1776
        %v1997 = vpop.f32.mrf.mxu0
        %v1998 = vadd.f32 %v1806, %v1997
        %v1999 = vpop.f32.mrf.mxu0
        %v2000 = vadd.f32 %v1810, %v1999
        %v2001 = vpop.f32.mrf.mxu0
        %v2002 = vadd.f32 %v1806, %v2001
        %v2003 = vpop.f32.mrf.mxu0
        %v2004 = vadd.f32 %v1810, %v2003
        %2005 = vmatprep.mubr.bf16.mxu0 0
        %2006 = vmatmul.mubr.bf16.gmra.mxu0 %v1777
        %v2007 = vpop.f32.mrf.mxu0
        %v2008 = vadd.f32 %v1806, %v2007
        %v2009 = vpop.f32.mrf.mxu0
        %v2010 = vadd.f32 %v1810, %v2009
        %v2011 = vpop.f32.mrf.mxu0
        %v2012 = vadd.f32 %v1806, %v2011
        %v2013 = vpop.f32.mrf.mxu0
        %v2014 = vadd.f32 %v1810, %v2013
        %2015 = vmatprep.mubr.bf16.mxu0 0
        %2016 = vmatmul.mubr.bf16.gmra.mxu0 %v1778
        %v2017 = vpop.f32.mrf.mxu0
        %v2018 = vadd.f32 %v1806, %v2017
        %v2019 = vpop.f32.mrf.mxu0
        %v2020 = vadd.f32 %v1810, %v2019
        %v2021 = vpop.f32.mrf.mxu0
        %v2022 = vadd.f32 %v1806, %v2021
        %v2023 = vpop.f32.mrf.mxu0
        %v2024 = vadd.f32 %v1810, %v2023
        %2025 = vmatprep.mubr.bf16.mxu0 0
        %2026 = vmatmul.mubr.bf16.gmra.mxu0 %v1779
        %v2027 = vpop.f32.mrf.mxu0
        %v2028 = vadd.f32 %v1806, %v2027
        %v2029 = vpop.f32.mrf.mxu0
        %v2030 = vadd.f32 %v1810, %v2029
        %v2031 = vpop.f32.mrf.mxu0
        %v2032 = vadd.f32 %v1806, %v2031
        %v2033 = vpop.f32.mrf.mxu0
        %v2034 = vadd.f32 %v1810, %v2033
        %2035 = vmatprep.mubr.bf16.mxu0 0
        %2036 = vmatmul.mubr.bf16.gmra.mxu0 %v1780
        %v2037 = vpop.f32.mrf.mxu0
        %v2038 = vadd.f32 %v1806, %v2037
        %v2039 = vpop.f32.mrf.mxu0
        %v2040 = vadd.f32 %v1810, %v2039
        %v2041 = vpop.f32.mrf.mxu0
        %v2042 = vadd.f32 %v1806, %v2041
        %v2043 = vpop.f32.mrf.mxu0
        %v2044 = vadd.f32 %v1810, %v2043
        %2045 = vmatprep.mubr.bf16.mxu0 0
        %2046 = vmatmul.mubr.bf16.gmra.mxu0 %v1781
        %v2047 = vpop.f32.mrf.mxu0
        %v2048 = vadd.f32 %v1806, %v2047
        %v2049 = vpop.f32.mrf.mxu0
        %v2050 = vadd.f32 %v1810, %v2049
        %v2051 = vpop.f32.mrf.mxu0
        %v2052 = vadd.f32 %v1806, %v2051
        %v2053 = vpop.f32.mrf.mxu0
        %v2054 = vadd.f32 %v1810, %v2053
        %2055 = vmatprep.mubr.bf16.mxu0 0
        %2056 = vmatmul.mubr.bf16.gmra.mxu0 %v1782
        %v2057 = vpop.f32.mrf.mxu0
        %v2058 = vadd.f32 %v1806, %v2057
        %v2059 = vpop.f32.mrf.mxu0
        %v2060 = vadd.f32 %v1810, %v2059
        %v2061 = vpop.f32.mrf.mxu0
        %v2062 = vadd.f32 %v1806, %v2061
        %v2063 = vpop.f32.mrf.mxu0
        %v2064 = vadd.f32 %v1810, %v2063
        %2065 = vmatprep.mubr.bf16.mxu0 0
        %2066 = vmatmul.mubr.bf16.gmra.mxu0 %v1783
        %v2067 = vpop.f32.mrf.mxu0
        %v2068 = vadd.f32 %v1806, %v2067
        %v2069 = vpop.f32.mrf.mxu0
        %v2070 = vadd.f32 %v1810, %v2069
        %v2071 = vpop.f32.mrf.mxu0
        %v2072 = vadd.f32 %v1806, %v2071
        %v2073 = vpop.f32.mrf.mxu0
        %v2074 = vadd.f32 %v1810, %v2073
        %2075 = vmatprep.mubr.bf16.mxu0 0
        %2076 = vmatmul.mubr.bf16.gmra.mxu0 %v1784
        %v2077 = vpop.f32.mrf.mxu0
        %v2078 = vadd.f32 %v1806, %v2077
        %v2079 = vpop.f32.mrf.mxu0
        %v2080 = vadd.f32 %v1810, %v2079
        %v2081 = vpop.f32.mrf.mxu0
        %v2082 = vadd.f32 %v1806, %v2081
        %v2083 = vpop.f32.mrf.mxu0
        %v2084 = vadd.f32 %v1810, %v2083
        %2085 = vdwg.mxu0
        %v2086 = vmax.f32 %v1928, 0.0
        %v2087 = vmax.f32 %v1930, 0.0
        %v2088 = vmax.f32 %v1932, 0.0
        %v2089 = vmax.f32 %v1934, 0.0
        %v2090 = vmax.f32 %v1938, 0.0
        %v2091 = vmax.f32 %v1940, 0.0
        %v2092 = vmax.f32 %v1942, 0.0
        %v2093 = vmax.f32 %v1944, 0.0
        %v2094 = vmax.f32 %v1948, 0.0
        %v2095 = vmax.f32 %v1950, 0.0
        %v2096 = vmax.f32 %v1952, 0.0
        %v2097 = vmax.f32 %v1954, 0.0
        %v2098 = vmax.f32 %v1958, 0.0
        %v2099 = vmax.f32 %v1960, 0.0
        %v2100 = vmax.f32 %v1962, 0.0
        %v2101 = vmax.f32 %v1964, 0.0
        %v2102 = vmax.f32 %v1968, 0.0
        %v2103 = vmax.f32 %v1970, 0.0
        %v2104 = vmax.f32 %v1972, 0.0
        %v2105 = vmax.f32 %v1974, 0.0
        %v2106 = vmax.f32 %v1978, 0.0
        %v2107 = vmax.f32 %v1980, 0.0
        %v2108 = vmax.f32 %v1982, 0.0
        %v2109 = vmax.f32 %v1984, 0.0
        %v2110 = vmax.f32 %v1988, 0.0
        %v2111 = vmax.f32 %v1990, 0.0
        %v2112 = vmax.f32 %v1992, 0.0
        %v2113 = vmax.f32 %v1994, 0.0
        %v2114 = vmax.f32 %v1998, 0.0
        %v2115 = vmax.f32 %v2000, 0.0
        %v2116 = vmax.f32 %v2002, 0.0
        %v2117 = vmax.f32 %v2004, 0.0
        %v2118 = vmax.f32 %v2008, 0.0
        %v2119 = vmax.f32 %v2010, 0.0
        %v2120 = vmax.f32 %v2012, 0.0
        %v2121 = vmax.f32 %v2014, 0.0
        %v2122 = vmax.f32 %v2018, 0.0
        %v2123 = vmax.f32 %v2020, 0.0
        %v2124 = vmax.f32 %v2022, 0.0
        %v2125 = vmax.f32 %v2024, 0.0
        %v2126 = vmax.f32 %v2028, 0.0
        %v2127 = vmax.f32 %v2030, 0.0
        %v2128 = vmax.f32 %v2032, 0.0
        %v2129 = vmax.f32 %v2034, 0.0
        %v2130 = vmax.f32 %v2038, 0.0
        %v2131 = vmax.f32 %v2040, 0.0
        %v2132 = vmax.f32 %v2042, 0.0
        %v2133 = vmax.f32 %v2044, 0.0
        %v2134 = vmax.f32 %v2048, 0.0
        %v2135 = vmax.f32 %v2050, 0.0
        %v2136 = vmax.f32 %v2052, 0.0
        %v2137 = vmax.f32 %v2054, 0.0
        %v2138 = vmax.f32 %v2058, 0.0
        %v2139 = vmax.f32 %v2060, 0.0
        %v2140 = vmax.f32 %v2062, 0.0
        %v2141 = vmax.f32 %v2064, 0.0
        %v2142 = vmax.f32 %v2068, 0.0
        %v2143 = vmax.f32 %v2070, 0.0
        %v2144 = vmax.f32 %v2072, 0.0
        %v2145 = vmax.f32 %v2074, 0.0
        %v2146 = vmax.f32 %v2078, 0.0
        %v2147 = vmax.f32 %v2080, 0.0
        %v2148 = vmax.f32 %v2082, 0.0
        %v2149 = vmax.f32 %v2084, 0.0
        %v2150 = vpack.c.bf16 %v2088, %v2086
        %v2151 = vpack.c.bf16 %v2089, %v2087
        %v2152 = vpack.c.bf16 %v2092, %v2090
        %v2153 = vpack.c.bf16 %v2093, %v2091
        %v2154 = vpack.c.bf16 %v2096, %v2094
        %v2155 = vpack.c.bf16 %v2097, %v2095
        %v2156 = vpack.c.bf16 %v2100, %v2098
        %v2157 = vpack.c.bf16 %v2101, %v2099
        %v2158 = vpack.c.bf16 %v2104, %v2102
        %v2159 = vpack.c.bf16 %v2105, %v2103
        %v2160 = vpack.c.bf16 %v2108, %v2106
        %v2161 = vpack.c.bf16 %v2109, %v2107
        %v2162 = vpack.c.bf16 %v2112, %v2110
        %v2163 = vpack.c.bf16 %v2113, %v2111
        %v2164 = vpack.c.bf16 %v2116, %v2114
        %v2165 = vpack.c.bf16 %v2117, %v2115
        %v2166 = vpack.c.bf16 %v2120, %v2118
        %v2167 = vpack.c.bf16 %v2121, %v2119
        %v2168 = vpack.c.bf16 %v2124, %v2122
        %v2169 = vpack.c.bf16 %v2125, %v2123
        %v2170 = vpack.c.bf16 %v2128, %v2126
        %v2171 = vpack.c.bf16 %v2129, %v2127
        %v2172 = vpack.c.bf16 %v2132, %v2130
        %v2173 = vpack.c.bf16 %v2133, %v2131
        %v2174 = vpack.c.bf16 %v2136, %v2134
        %v2175 = vpack.c.bf16 %v2137, %v2135
        %v2176 = vpack.c.bf16 %v2140, %v2138
        %v2177 = vpack.c.bf16 %v2141, %v2139
        %v2178 = vpack.c.bf16 %v2144, %v2142
        %v2179 = vpack.c.bf16 %v2145, %v2143
        %v2180 = vpack.c.bf16 %v2148, %v2146
        %v2181 = vpack.c.bf16 %v2149, %v2147
        %v2182 = vld [vmem:[%s5] sm:$0xf]
        %v2183 = vld [vmem:[%s5 + $0x4] sm:$0xf]
        %v2184 = vld [vmem:[%s5 + $0x8] sm:$0xf]
        %v2185 = vld [vmem:[%s5 + $0xc] sm:$0xf]
        %v2186 = vld [vmem:[%s5 + $0x10] sm:$0xf]
        %v2187 = vld [vmem:[%s5 + $0x14] sm:$0xf]
        %v2188 = vld [vmem:[%s5 + $0x18] sm:$0xf]
        %v2189 = vld [vmem:[%s5 + $0x1c] sm:$0xf]
        %v2190 = vld [vmem:[%s5 + $0x20] sm:$0xf]
        %v2191 = vld [vmem:[%s5 + $0x24] sm:$0xf]
        %v2192 = vld [vmem:[%s5 + $0x28] sm:$0xf]
        %v2193 = vld [vmem:[%s5 + $0x2c] sm:$0xf]
        %v2194 = vld [vmem:[%s5 + $0x30] sm:$0xf]
        %v2195 = vld [vmem:[%s5 + $0x34] sm:$0xf]
        %v2196 = vld [vmem:[%s5 + $0x38] sm:$0xf]
        %v2197 = vld [vmem:[%s5 + $0x3c] sm:$0xf]
        %v2198 = vld [vmem:[%s5 + $0x40] sm:$0xf]
        %v2199 = vld [vmem:[%s5 + $0x44] sm:$0xf]
        %v2200 = vld [vmem:[%s5 + $0x48] sm:$0xf]
        %v2201 = vld [vmem:[%s5 + $0x4c] sm:$0xf]
        %v2202 = vld [vmem:[%s5 + $0x50] sm:$0xf]
        %v2203 = vld [vmem:[%s5 + $0x54] sm:$0xf]
        %v2204 = vld [vmem:[%s5 + $0x58] sm:$0xf]
        %v2205 = vld [vmem:[%s5 + $0x5c] sm:$0xf]
        %v2206 = vld [vmem:[%s5 + $0x60] sm:$0xf]
        %v2207 = vld [vmem:[%s5 + $0x64] sm:$0xf]
        %v2208 = vld [vmem:[%s5 + $0x68] sm:$0xf]
        %v2209 = vld [vmem:[%s5 + $0x6c] sm:$0xf]
        %v2210 = vld [vmem:[%s5 + $0x70] sm:$0xf]
        %v2211 = vld [vmem:[%s5 + $0x74] sm:$0xf]
        %v2212 = vld [vmem:[%s5 + $0x78] sm:$0xf]
        %v2213 = vld [vmem:[%s5 + $0x7c] sm:$0xf]
        %v2214 = vld [vmem:[%s6] sm:$0x1]
        %v2216 = vlaneseq
        %v2217 = vshrl.u32 %v2216, 7
        %v2218 = vsub.s32 0, %v2217
        %v2219 = vrot.slane %v2214, %v2218
        %v2253 = vunpack.c.l.b16 %v2182
        %v2254 = vunpack.c.l.b16 %v2183
        %v2255 = vunpack.c.l.b16 %v2184
        %v2256 = vunpack.c.l.b16 %v2185
        %v2257 = vunpack.c.l.b16 %v2186
        %v2258 = vunpack.c.l.b16 %v2187
        %v2259 = vunpack.c.l.b16 %v2188
        %v2260 = vunpack.c.l.b16 %v2189
        %v2261 = vunpack.c.l.b16 %v2190
        %v2262 = vunpack.c.l.b16 %v2191
        %v2263 = vunpack.c.l.b16 %v2192
        %v2264 = vunpack.c.l.b16 %v2193
        %v2265 = vunpack.c.l.b16 %v2194
        %v2266 = vunpack.c.l.b16 %v2195
        %v2267 = vunpack.c.l.b16 %v2196
        %v2268 = vunpack.c.l.b16 %v2197
        %v2269 = vunpack.c.l.b16 %v2198
        %v2270 = vunpack.c.l.b16 %v2199
        %v2271 = vunpack.c.l.b16 %v2200
        %v2272 = vunpack.c.l.b16 %v2201
        %v2273 = vunpack.c.l.b16 %v2202
        %v2274 = vunpack.c.l.b16 %v2203
        %v2275 = vunpack.c.l.b16 %v2204
        %v2276 = vunpack.c.l.b16 %v2205
        %v2277 = vunpack.c.l.b16 %v2206
        %v2278 = vunpack.c.l.b16 %v2207
        %v2279 = vunpack.c.l.b16 %v2208
        %v2280 = vunpack.c.l.b16 %v2209
        %v2281 = vunpack.c.l.b16 %v2210
        %v2282 = vunpack.c.l.b16 %v2211
        %v2283 = vunpack.c.l.b16 %v2212
        %v2284 = vunpack.c.l.b16 %v2213
        %v2285 = vpack.c.b16 %v2254, %v2253
        %v2286 = vpack.c.b16 %v2256, %v2255
        %v2287 = vpack.c.b16 %v2258, %v2257
        %v2288 = vpack.c.b16 %v2260, %v2259
        %v2289 = vpack.c.b16 %v2262, %v2261
        %v2290 = vpack.c.b16 %v2264, %v2263
        %v2291 = vpack.c.b16 %v2266, %v2265
        %v2292 = vpack.c.b16 %v2268, %v2267
        %v2293 = vpack.c.b16 %v2270, %v2269
        %v2294 = vpack.c.b16 %v2272, %v2271
        %v2295 = vpack.c.b16 %v2274, %v2273
        %v2296 = vpack.c.b16 %v2276, %v2275
        %v2297 = vpack.c.b16 %v2278, %v2277
        %v2298 = vpack.c.b16 %v2280, %v2279
        %v2299 = vpack.c.b16 %v2282, %v2281
        %v2300 = vpack.c.b16 %v2284, %v2283
        %2317 = vmatprep.subr.bf16.mxu0 0
        %2318 = vmatpush1.bf16.msra.mxu0 %v2292
        %2319 = vmatprep.subr.bf16.mxu0 0
        %2320 = vmatpush1.bf16.msra.mxu0 %v2291
        %2321 = vmatprep.subr.bf16.mxu0 0
        %2322 = vmatpush1.bf16.msra.mxu0 %v2290
        %2323 = vmatprep.subr.bf16.mxu0 0
        %2324 = vmatpush1.bf16.msra.mxu0 %v2289
        %2325 = vmatprep.subr.bf16.mxu0 0
        %2326 = vmatpush1.bf16.msra.mxu0 %v2288
        %2327 = vmatprep.subr.bf16.mxu0 0
        %2328 = vmatpush1.bf16.msra.mxu0 %v2287
        %2329 = vmatprep.subr.bf16.mxu0 0
        %2330 = vmatpush1.bf16.msra.mxu0 %v2286
        %2331 = vmatprep.subr.bf16.mxu0 0
        %2332 = vmatpush1.bf16.msra.mxu0 %v2285
        %2333 = vmatprep.subr.bf16.mxu0 0
        %2334 = vmatpush2.bf16.msra.mxu0 %v2300
        %2335 = vmatprep.subr.bf16.mxu0 0
        %2336 = vmatpush2.bf16.msra.mxu0 %v2299
        %2337 = vmatprep.subr.bf16.mxu0 0
        %2338 = vmatpush2.bf16.msra.mxu0 %v2298
        %2339 = vmatprep.subr.bf16.mxu0 0
        %2340 = vmatpush2.bf16.msra.mxu0 %v2297
        %2341 = vmatprep.subr.bf16.mxu0 0
        %2342 = vmatpush2.bf16.msra.mxu0 %v2296
        %2343 = vmatprep.subr.bf16.mxu0 0
        %2344 = vmatpush2.bf16.msra.mxu0 %v2295
        %2345 = vmatprep.subr.bf16.mxu0 0
        %2346 = vmatpush2.bf16.msra.mxu0 %v2294
        %2347 = vmatprep.subr.bf16.mxu0 0
        %2348 = vmatpush2.bf16.msra.mxu0 %v2293
        %2349 = vmatprep.mubr.bf16.mxu0 %v2151
        %2350 = vmatmul.mubr.bf16.gmra.mxu0 %v2150
        %v2351 = vpop.f32.mrf.mxu0
        %v2352 = vadd.f32 %v2219, %v2351
        %v2353 = vpop.f32.mrf.mxu0
        %v2354 = vpop.f32.mrf.mxu0
        %v2355 = vadd.f32 %v2219, %v2354
        %v2356 = vpop.f32.mrf.mxu0
        %2357 = vmatprep.mubr.bf16.mxu0 %v2153
        %2358 = vmatmul.mubr.bf16.gmra.mxu0 %v2152
        %v2359 = vpop.f32.mrf.mxu0
        %v2360 = vadd.f32 %v2219, %v2359
        %v2361 = vpop.f32.mrf.mxu0
        %v2362 = vpop.f32.mrf.mxu0
        %v2363 = vadd.f32 %v2219, %v2362
        %v2364 = vpop.f32.mrf.mxu0
        %2365 = vmatprep.mubr.bf16.mxu0 %v2155
        %2366 = vmatmul.mubr.bf16.gmra.mxu0 %v2154
        %v2367 = vpop.f32.mrf.mxu0
        %v2368 = vadd.f32 %v2219, %v2367
        %v2369 = vpop.f32.mrf.mxu0
        %v2370 = vpop.f32.mrf.mxu0
        %v2371 = vadd.f32 %v2219, %v2370
        %v2372 = vpop.f32.mrf.mxu0
        %2373 = vmatprep.mubr.bf16.mxu0 %v2157
        %2374 = vmatmul.mubr.bf16.gmra.mxu0 %v2156
        %v2375 = vpop.f32.mrf.mxu0
        %v2376 = vadd.f32 %v2219, %v2375
        %v2377 = vpop.f32.mrf.mxu0
        %v2378 = vpop.f32.mrf.mxu0
        %v2379 = vadd.f32 %v2219, %v2378
        %v2380 = vpop.f32.mrf.mxu0
        %2381 = vmatprep.mubr.bf16.mxu0 %v2159
        %2382 = vmatmul.mubr.bf16.gmra.mxu0 %v2158
        %v2383 = vpop.f32.mrf.mxu0
        %v2384 = vadd.f32 %v2219, %v2383
        %v2385 = vpop.f32.mrf.mxu0
        %v2386 = vpop.f32.mrf.mxu0
        %v2387 = vadd.f32 %v2219, %v2386
        %v2388 = vpop.f32.mrf.mxu0
        %2389 = vmatprep.mubr.bf16.mxu0 %v2161
        %2390 = vmatmul.mubr.bf16.gmra.mxu0 %v2160
        %v2391 = vpop.f32.mrf.mxu0
        %v2392 = vadd.f32 %v2219, %v2391
        %v2393 = vpop.f32.mrf.mxu0
        %v2394 = vpop.f32.mrf.mxu0
        %v2395 = vadd.f32 %v2219, %v2394
        %v2396 = vpop.f32.mrf.mxu0
        %2397 = vmatprep.mubr.bf16.mxu0 %v2163
        %2398 = vmatmul.mubr.bf16.gmra.mxu0 %v2162
        %v2399 = vpop.f32.mrf.mxu0
        %v2400 = vadd.f32 %v2219, %v2399
        %v2401 = vpop.f32.mrf.mxu0
        %v2402 = vpop.f32.mrf.mxu0
        %v2403 = vadd.f32 %v2219, %v2402
        %v2404 = vpop.f32.mrf.mxu0
        %2405 = vmatprep.mubr.bf16.mxu0 %v2165
        %2406 = vmatmul.mubr.bf16.gmra.mxu0 %v2164
        %v2407 = vpop.f32.mrf.mxu0
        %v2408 = vadd.f32 %v2219, %v2407
        %v2409 = vpop.f32.mrf.mxu0
        %v2410 = vpop.f32.mrf.mxu0
        %v2411 = vadd.f32 %v2219, %v2410
        %v2412 = vpop.f32.mrf.mxu0
        %2413 = vmatprep.mubr.bf16.mxu0 %v2167
        %2414 = vmatmul.mubr.bf16.gmra.mxu0 %v2166
        %v2415 = vpop.f32.mrf.mxu0
        %v2416 = vadd.f32 %v2219, %v2415
        %v2417 = vpop.f32.mrf.mxu0
        %v2418 = vpop.f32.mrf.mxu0
        %v2419 = vadd.f32 %v2219, %v2418
        %v2420 = vpop.f32.mrf.mxu0
        %2421 = vmatprep.mubr.bf16.mxu0 %v2169
        %2422 = vmatmul.mubr.bf16.gmra.mxu0 %v2168
        %v2423 = vpop.f32.mrf.mxu0
        %v2424 = vadd.f32 %v2219, %v2423
        %v2425 = vpop.f32.mrf.mxu0
        %v2426 = vpop.f32.mrf.mxu0
        %v2427 = vadd.f32 %v2219, %v2426
        %v2428 = vpop.f32.mrf.mxu0
        %2429 = vmatprep.mubr.bf16.mxu0 %v2171
        %2430 = vmatmul.mubr.bf16.gmra.mxu0 %v2170
        %v2431 = vpop.f32.mrf.mxu0
        %v2432 = vadd.f32 %v2219, %v2431
        %v2433 = vpop.f32.mrf.mxu0
        %v2434 = vpop.f32.mrf.mxu0
        %v2435 = vadd.f32 %v2219, %v2434
        %v2436 = vpop.f32.mrf.mxu0
        %2437 = vmatprep.mubr.bf16.mxu0 %v2173
        %2438 = vmatmul.mubr.bf16.gmra.mxu0 %v2172
        %v2439 = vpop.f32.mrf.mxu0
        %v2440 = vadd.f32 %v2219, %v2439
        %v2441 = vpop.f32.mrf.mxu0
        %v2442 = vpop.f32.mrf.mxu0
        %v2443 = vadd.f32 %v2219, %v2442
        %v2444 = vpop.f32.mrf.mxu0
        %2445 = vmatprep.mubr.bf16.mxu0 %v2175
        %2446 = vmatmul.mubr.bf16.gmra.mxu0 %v2174
        %v2447 = vpop.f32.mrf.mxu0
        %v2448 = vadd.f32 %v2219, %v2447
        %v2449 = vpop.f32.mrf.mxu0
        %v2450 = vpop.f32.mrf.mxu0
        %v2451 = vadd.f32 %v2219, %v2450
        %v2452 = vpop.f32.mrf.mxu0
        %2453 = vmatprep.mubr.bf16.mxu0 %v2177
        %2454 = vmatmul.mubr.bf16.gmra.mxu0 %v2176
        %v2455 = vpop.f32.mrf.mxu0
        %v2456 = vadd.f32 %v2219, %v2455
        %v2457 = vpop.f32.mrf.mxu0
        %v2458 = vpop.f32.mrf.mxu0
        %v2459 = vadd.f32 %v2219, %v2458
        %v2460 = vpop.f32.mrf.mxu0
        %2461 = vmatprep.mubr.bf16.mxu0 %v2179
        %2462 = vmatmul.mubr.bf16.gmra.mxu0 %v2178
        %v2463 = vpop.f32.mrf.mxu0
        %v2464 = vadd.f32 %v2219, %v2463
        %v2465 = vpop.f32.mrf.mxu0
        %v2466 = vpop.f32.mrf.mxu0
        %v2467 = vadd.f32 %v2219, %v2466
        %v2468 = vpop.f32.mrf.mxu0
        %2469 = vmatprep.mubr.bf16.mxu0 %v2181
        %2470 = vmatmul.mubr.bf16.gmra.mxu0 %v2180
        %v2471 = vpop.f32.mrf.mxu0
        %v2472 = vadd.f32 %v2219, %v2471
        %v2473 = vpop.f32.mrf.mxu0
        %v2474 = vpop.f32.mrf.mxu0
        %v2475 = vadd.f32 %v2219, %v2474
        %v2476 = vpop.f32.mrf.mxu0
        %2477 = vdwg.mxu0
        %2478 = vst [vmem:[%s285] sm:$0xff] %v2352
        %2479 = vst [vmem:[%s285 + $0x8] sm:$0xff] %v2355
        %2480 = vst [vmem:[%s285 + $0x10] sm:$0xff] %v2360
        %2481 = vst [vmem:[%s285 + $0x18] sm:$0xff] %v2363
        %2482 = vst [vmem:[%s285 + $0x20] sm:$0xff] %v2368
        %2483 = vst [vmem:[%s285 + $0x28] sm:$0xff] %v2371
        %2484 = vst [vmem:[%s285 + $0x30] sm:$0xff] %v2376
        %2485 = vst [vmem:[%s285 + $0x38] sm:$0xff] %v2379
        %2486 = vst [vmem:[%s285 + $0x40] sm:$0xff] %v2384
        %2487 = vst [vmem:[%s285 + $0x48] sm:$0xff] %v2387
        %2488 = vst [vmem:[%s285 + $0x50] sm:$0xff] %v2392
        %2489 = vst [vmem:[%s285 + $0x58] sm:$0xff] %v2395
        %2490 = vst [vmem:[%s285 + $0x60] sm:$0xff] %v2400
        %2491 = vst [vmem:[%s285 + $0x68] sm:$0xff] %v2403
        %2492 = vst [vmem:[%s285 + $0x70] sm:$0xff] %v2408
        %2493 = vst [vmem:[%s285 + $0x78] sm:$0xff] %v2411
        %2494 = vst [vmem:[%s285 + $0x80] sm:$0xff] %v2416
        %2495 = vst [vmem:[%s285 + $0x88] sm:$0xff] %v2419
        %2496 = vst [vmem:[%s285 + $0x90] sm:$0xff] %v2424
        %2497 = vst [vmem:[%s285 + $0x98] sm:$0xff] %v2427
        %2498 = vst [vmem:[%s285 + $0xa0] sm:$0xff] %v2432
        %2499 = vst [vmem:[%s285 + $0xa8] sm:$0xff] %v2435
        %2500 = vst [vmem:[%s285 + $0xb0] sm:$0xff] %v2440
        %2501 = vst [vmem:[%s285 + $0xb8] sm:$0xff] %v2443
        %2502 = vst [vmem:[%s285 + $0xc0] sm:$0xff] %v2448
        %2503 = vst [vmem:[%s285 + $0xc8] sm:$0xff] %v2451
        %2504 = vst [vmem:[%s285 + $0xd0] sm:$0xff] %v2456
        %2505 = vst [vmem:[%s285 + $0xd8] sm:$0xff] %v2459
        %2506 = vst [vmem:[%s285 + $0xe0] sm:$0xff] %v2464
        %2507 = vst [vmem:[%s285 + $0xe8] sm:$0xff] %v2467
        %2508 = vst [vmem:[%s285 + $0xf0] sm:$0xff] %v2472
        %2509 = vst [vmem:[%s285 + $0xf8] sm:$0xff] %v2475
        %s2510 = sand.u32 %s178, 1
        %s2511 = sand.u32 %s178, 1
        %s2512 = smul.addr %s2511, 256
        %s2513 = scalar_lea.vmem [#allocation2], %s2512
        // Predicated region
        $region49: #{minst_nn_forward.1} parent=47 // pred_check
          %p2514 = pneg %p188
        $region50: #{minst_nn_forward.1} parent=47 // pred_check_branch
          %2516 = sbr.rel (%p2514) target = $region52
        $region51: #{minst_nn_forward.1} parent=47 // pred_region
          %s2517 = smul.u32 32, %s18
          %s2518 = ssub.s32 38, %s2517
          %p2519 = scmp.lt.s32.totalorder %s2518, 32
          %s2520 = scalar_select %p2519, %s2518, 32
          %s2521 = smul.u32 128, %s2520
          %p2522 = scmp.ne.s32.totalorder 0, %s2521
          %s2523 = smul.addr %s2517, 8
          %s2524 = scalar_lea.vmem %s7, %s2523
          // Predicated region
          $region53: #{minst_nn_forward.1} parent=51 // pred_check
            %p2525 = pneg %p2522
          $region54: #{minst_nn_forward.1} parent=51 // pred_check_branch
            %2527 = sbr.rel (%p2525) target = $region56
          $region55: #{minst_nn_forward.1} parent=51 // pred_region
            // Predicated region
            $region57: #{minst_nn_forward.1} parent=55 // pred_check
              _
            $region58: #{minst_nn_forward.1} parent=55 // pred_check_branch
              %2529 = sbr.rel (0) target = $region60
            $region59: #{minst_nn_forward.1} parent=55 // pred_region
              // Predicated region
              $region79: #{minst_nn_forward.1} parent=59 // pred_check
                _
              $region80: #{minst_nn_forward.1} parent=59 // pred_check_branch
                %2641 = sbr.rel (0) target = $region82
              $region81: #{minst_nn_forward.1} parent=59 // pred_region
                %s2642 = sshrl.u32 %s2520, 5
                // While loop
                $region83: #{minst_nn_forward.1} parent=81 // loop_pre_header
                  _
                $region84: #{minst_nn_forward.1} parent=81 // loop_header
                  %s2644 = sphi 0, %s2646
                  %p2645 = scmp.ge.s32.totalorder %s2644, %s2642
                  %s2649 = sphi 0, %s2718
                  %s2650 = sphi %s2513, %s2721
                  %s2651 = sphi %s2524, %s2722
                $region85: #{minst_nn_forward.1} parent=81 // loop_header_branch
                  %2648 = sbr.rel (%p2645) target = $region89
                $region86: #{minst_nn_forward.1} parent=81 // loop_body
                  %v2652 = vld [vmem:[%s2650] sm:$0xff]
                  %2653 = vst [vmem:[%s2651] sm:$0xff] %v2652
                  %v2654 = vld [vmem:[%s2650 + $0x8] sm:$0xff]
                  %2655 = vst [vmem:[%s2651 + $0x8] sm:$0xff] %v2654
                  %v2656 = vld [vmem:[%s2650 + $0x10] sm:$0xff]
                  %2657 = vst [vmem:[%s2651 + $0x10] sm:$0xff] %v2656
                  %v2658 = vld [vmem:[%s2650 + $0x18] sm:$0xff]
                  %2659 = vst [vmem:[%s2651 + $0x18] sm:$0xff] %v2658
                  %v2660 = vld [vmem:[%s2650 + $0x20] sm:$0xff]
                  %2661 = vst [vmem:[%s2651 + $0x20] sm:$0xff] %v2660
                  %v2662 = vld [vmem:[%s2650 + $0x28] sm:$0xff]
                  %2663 = vst [vmem:[%s2651 + $0x28] sm:$0xff] %v2662
                  %v2664 = vld [vmem:[%s2650 + $0x30] sm:$0xff]
                  %2665 = vst [vmem:[%s2651 + $0x30] sm:$0xff] %v2664
                  %v2666 = vld [vmem:[%s2650 + $0x38] sm:$0xff]
                  %2667 = vst [vmem:[%s2651 + $0x38] sm:$0xff] %v2666
                  %v2668 = vld [vmem:[%s2650 + $0x40] sm:$0xff]
                  %2669 = vst [vmem:[%s2651 + $0x40] sm:$0xff] %v2668
                  %v2670 = vld [vmem:[%s2650 + $0x48] sm:$0xff]
                  %2671 = vst [vmem:[%s2651 + $0x48] sm:$0xff] %v2670
                  %v2672 = vld [vmem:[%s2650 + $0x50] sm:$0xff]
                  %2673 = vst [vmem:[%s2651 + $0x50] sm:$0xff] %v2672
                  %v2674 = vld [vmem:[%s2650 + $0x58] sm:$0xff]
                  %2675 = vst [vmem:[%s2651 + $0x58] sm:$0xff] %v2674
                  %v2676 = vld [vmem:[%s2650 + $0x60] sm:$0xff]
                  %2677 = vst [vmem:[%s2651 + $0x60] sm:$0xff] %v2676
                  %v2678 = vld [vmem:[%s2650 + $0x68] sm:$0xff]
                  %2679 = vst [vmem:[%s2651 + $0x68] sm:$0xff] %v2678
                  %v2680 = vld [vmem:[%s2650 + $0x70] sm:$0xff]
                  %2681 = vst [vmem:[%s2651 + $0x70] sm:$0xff] %v2680
                  %v2682 = vld [vmem:[%s2650 + $0x78] sm:$0xff]
                  %2683 = vst [vmem:[%s2651 + $0x78] sm:$0xff] %v2682
                  %v2684 = vld [vmem:[%s2650 + $0x80] sm:$0xff]
                  %2685 = vst [vmem:[%s2651 + $0x80] sm:$0xff] %v2684
                  %v2686 = vld [vmem:[%s2650 + $0x88] sm:$0xff]
                  %2687 = vst [vmem:[%s2651 + $0x88] sm:$0xff] %v2686
                  %v2688 = vld [vmem:[%s2650 + $0x90] sm:$0xff]
                  %2689 = vst [vmem:[%s2651 + $0x90] sm:$0xff] %v2688
                  %v2690 = vld [vmem:[%s2650 + $0x98] sm:$0xff]
                  %2691 = vst [vmem:[%s2651 + $0x98] sm:$0xff] %v2690
                  %v2692 = vld [vmem:[%s2650 + $0xa0] sm:$0xff]
                  %2693 = vst [vmem:[%s2651 + $0xa0] sm:$0xff] %v2692
                  %v2694 = vld [vmem:[%s2650 + $0xa8] sm:$0xff]
                  %2695 = vst [vmem:[%s2651 + $0xa8] sm:$0xff] %v2694
                  %v2696 = vld [vmem:[%s2650 + $0xb0] sm:$0xff]
                  %2697 = vst [vmem:[%s2651 + $0xb0] sm:$0xff] %v2696
                  %v2698 = vld [vmem:[%s2650 + $0xb8] sm:$0xff]
                  %2699 = vst [vmem:[%s2651 + $0xb8] sm:$0xff] %v2698
                  %v2700 = vld [vmem:[%s2650 + $0xc0] sm:$0xff]
                  %2701 = vst [vmem:[%s2651 + $0xc0] sm:$0xff] %v2700
                  %v2702 = vld [vmem:[%s2650 + $0xc8] sm:$0xff]
                  %2703 = vst [vmem:[%s2651 + $0xc8] sm:$0xff] %v2702
                  %v2704 = vld [vmem:[%s2650 + $0xd0] sm:$0xff]
                  %2705 = vst [vmem:[%s2651 + $0xd0] sm:$0xff] %v2704
                  %v2706 = vld [vmem:[%s2650 + $0xd8] sm:$0xff]
                  %2707 = vst [vmem:[%s2651 + $0xd8] sm:$0xff] %v2706
                  %v2708 = vld [vmem:[%s2650 + $0xe0] sm:$0xff]
                  %2709 = vst [vmem:[%s2651 + $0xe0] sm:$0xff] %v2708
                  %v2710 = vld [vmem:[%s2650 + $0xe8] sm:$0xff]
                  %2711 = vst [vmem:[%s2651 + $0xe8] sm:$0xff] %v2710
                  %v2712 = vld [vmem:[%s2650 + $0xf0] sm:$0xff]
                  %2713 = vst [vmem:[%s2651 + $0xf0] sm:$0xff] %v2712
                  %v2714 = vld [vmem:[%s2650 + $0xf8] sm:$0xff]
                  %2715 = vst [vmem:[%s2651 + $0xf8] sm:$0xff] %v2714
                  %s2716 = sadd.s32 1, %s2649
                  %p2717 = scmp.ge.s32.totalorder %s2716, %s2642
                  %s2718 = scalar_select %p2717, 0, %s2716
                  %s2719 = smul.u32 %s2718, 256
                  %s2720 = smul.u32 %s2718, 256
                  %s2721 = scalar_lea.vmem %s2513, %s2719 [#allocation2]
                  %s2722 = scalar_lea.vmem %s2524, %s2720
                $region87: #{minst_nn_forward.1} parent=81 // loop_footer
                  %s2646 = sadd.s32 %s2644, 1
                $region88: #{minst_nn_forward.1} parent=81 // loop_footer_branch
                  %2643 = sbr.rel target = $region84
                $region89: #{minst_nn_forward.1} parent=81 // loop_exit
                  _
                %s2723 = sshrl.u32 %s2520, 5
                %s2724 = sand.u32 %s2520, 31
                %s2725 = smul.u32 %s2723, 32
                %s2726 = smul.u32 8, %s2725
                %s2727 = scalar_lea.vmem %s2513, %s2726 [#allocation2]
                %s2728 = smul.u32 8, %s2725
                %s2729 = scalar_lea.vmem %s2524, %s2728
                // While loop
                $region90: #{minst_nn_forward.1} parent=81 // loop_pre_header
                  _
                $region91: #{minst_nn_forward.1} parent=81 // loop_header
                  %s2731 = sphi 0, %s2733
                  %p2732 = scmp.ge.s32.totalorder %s2731, %s2724
                  %s2736 = sphi 0, %s2743
                  %s2737 = sphi %s2727, %s2746
                  %s2738 = sphi %s2729, %s2747
                $region92: #{minst_nn_forward.1} parent=81 // loop_header_branch
                  %2735 = sbr.rel (%p2732) target = $region96
                $region93: #{minst_nn_forward.1} parent=81 // loop_body
                  %v2739 = vld [vmem:[%s2737] sm:$0xff]
                  %2740 = vst [vmem:[%s2738] sm:$0xff] %v2739
                  %s2741 = sadd.s32 1, %s2736
                  %p2742 = scmp.ge.s32.totalorder %s2741, %s2724
                  %s2743 = scalar_select %p2742, 0, %s2741
                  %s2744 = smul.u32 %s2743, 8
                  %s2745 = smul.u32 %s2743, 8
                  %s2746 = scalar_lea.vmem %s2727, %s2744 [#allocation2]
                  %s2747 = scalar_lea.vmem %s2729, %s2745
                $region94: #{minst_nn_forward.1} parent=81 // loop_footer
                  %s2733 = sadd.s32 %s2731, 1
                $region95: #{minst_nn_forward.1} parent=81 // loop_footer_branch
                  %2730 = sbr.rel target = $region91
                $region96: #{minst_nn_forward.1} parent=81 // loop_exit
                  _
              $region82: #{minst_nn_forward.1} parent=59 // pred_fallthru
                _
              // Predicated region
              $region97: #{minst_nn_forward.1} parent=59 // pred_check
                _
              $region98: #{minst_nn_forward.1} parent=59 // pred_check_branch
                %2749 = sbr.rel target = $region100
              $region99: #{minst_nn_forward.1} parent=59 // pred_region
                _
              $region100: #{minst_nn_forward.1} parent=59 // pred_fallthru
                _
            $region60: #{minst_nn_forward.1} parent=55 // pred_fallthru
              _
            // Predicated region
            $region61: #{minst_nn_forward.1} parent=55 // pred_check
              _
            $region62: #{minst_nn_forward.1} parent=55 // pred_check_branch
              %2531 = sbr.rel target = $region64
            $region63: #{minst_nn_forward.1} parent=55 // pred_region
              %s2533 = ssub.s32 256, 1
              %s2534 = sshrl.u32 %s2520, 5
              // While loop
              $region65: #{minst_nn_forward.1} parent=63 // loop_pre_header
                _
              $region66: #{minst_nn_forward.1} parent=63 // loop_header
                %s2536 = sphi 0, %s2538
                %p2537 = scmp.ge.s32.totalorder %s2536, %s2534
                %s2541 = sphi 0, %s2610
                %s2542 = sphi %s2513, %s2613
                %s2543 = sphi %s2524, %s2614
              $region67: #{minst_nn_forward.1} parent=63 // loop_header_branch
                %2540 = sbr.rel (%p2537) target = $region71
              $region68: #{minst_nn_forward.1} parent=63 // loop_body
                %v2544 = vld [vmem:[%s2542] sm:%s2533]
                %2545 = vst [vmem:[%s2543] sm:%s2533] %v2544
                %v2546 = vld [vmem:[%s2542 + $0x8] sm:%s2533]
                %2547 = vst [vmem:[%s2543 + $0x8] sm:%s2533] %v2546
                %v2548 = vld [vmem:[%s2542 + $0x10] sm:%s2533]
                %2549 = vst [vmem:[%s2543 + $0x10] sm:%s2533] %v2548
                %v2550 = vld [vmem:[%s2542 + $0x18] sm:%s2533]
                %2551 = vst [vmem:[%s2543 + $0x18] sm:%s2533] %v2550
                %v2552 = vld [vmem:[%s2542 + $0x20] sm:%s2533]
                %2553 = vst [vmem:[%s2543 + $0x20] sm:%s2533] %v2552
                %v2554 = vld [vmem:[%s2542 + $0x28] sm:%s2533]
                %2555 = vst [vmem:[%s2543 + $0x28] sm:%s2533] %v2554
                %v2556 = vld [vmem:[%s2542 + $0x30] sm:%s2533]
                %2557 = vst [vmem:[%s2543 + $0x30] sm:%s2533] %v2556
                %v2558 = vld [vmem:[%s2542 + $0x38] sm:%s2533]
                %2559 = vst [vmem:[%s2543 + $0x38] sm:%s2533] %v2558
                %v2560 = vld [vmem:[%s2542 + $0x40] sm:%s2533]
                %2561 = vst [vmem:[%s2543 + $0x40] sm:%s2533] %v2560
                %v2562 = vld [vmem:[%s2542 + $0x48] sm:%s2533]
                %2563 = vst [vmem:[%s2543 + $0x48] sm:%s2533] %v2562
                %v2564 = vld [vmem:[%s2542 + $0x50] sm:%s2533]
                %2565 = vst [vmem:[%s2543 + $0x50] sm:%s2533] %v2564
                %v2566 = vld [vmem:[%s2542 + $0x58] sm:%s2533]
                %2567 = vst [vmem:[%s2543 + $0x58] sm:%s2533] %v2566
                %v2568 = vld [vmem:[%s2542 + $0x60] sm:%s2533]
                %2569 = vst [vmem:[%s2543 + $0x60] sm:%s2533] %v2568
                %v2570 = vld [vmem:[%s2542 + $0x68] sm:%s2533]
                %2571 = vst [vmem:[%s2543 + $0x68] sm:%s2533] %v2570
                %v2572 = vld [vmem:[%s2542 + $0x70] sm:%s2533]
                %2573 = vst [vmem:[%s2543 + $0x70] sm:%s2533] %v2572
                %v2574 = vld [vmem:[%s2542 + $0x78] sm:%s2533]
                %2575 = vst [vmem:[%s2543 + $0x78] sm:%s2533] %v2574
                %v2576 = vld [vmem:[%s2542 + $0x80] sm:%s2533]
                %2577 = vst [vmem:[%s2543 + $0x80] sm:%s2533] %v2576
                %v2578 = vld [vmem:[%s2542 + $0x88] sm:%s2533]
                %2579 = vst [vmem:[%s2543 + $0x88] sm:%s2533] %v2578
                %v2580 = vld [vmem:[%s2542 + $0x90] sm:%s2533]
                %2581 = vst [vmem:[%s2543 + $0x90] sm:%s2533] %v2580
                %v2582 = vld [vmem:[%s2542 + $0x98] sm:%s2533]
                %2583 = vst [vmem:[%s2543 + $0x98] sm:%s2533] %v2582
                %v2584 = vld [vmem:[%s2542 + $0xa0] sm:%s2533]
                %2585 = vst [vmem:[%s2543 + $0xa0] sm:%s2533] %v2584
                %v2586 = vld [vmem:[%s2542 + $0xa8] sm:%s2533]
                %2587 = vst [vmem:[%s2543 + $0xa8] sm:%s2533] %v2586
                %v2588 = vld [vmem:[%s2542 + $0xb0] sm:%s2533]
                %2589 = vst [vmem:[%s2543 + $0xb0] sm:%s2533] %v2588
                %v2590 = vld [vmem:[%s2542 + $0xb8] sm:%s2533]
                %2591 = vst [vmem:[%s2543 + $0xb8] sm:%s2533] %v2590
                %v2592 = vld [vmem:[%s2542 + $0xc0] sm:%s2533]
                %2593 = vst [vmem:[%s2543 + $0xc0] sm:%s2533] %v2592
                %v2594 = vld [vmem:[%s2542 + $0xc8] sm:%s2533]
                %2595 = vst [vmem:[%s2543 + $0xc8] sm:%s2533] %v2594
                %v2596 = vld [vmem:[%s2542 + $0xd0] sm:%s2533]
                %2597 = vst [vmem:[%s2543 + $0xd0] sm:%s2533] %v2596
                %v2598 = vld [vmem:[%s2542 + $0xd8] sm:%s2533]
                %2599 = vst [vmem:[%s2543 + $0xd8] sm:%s2533] %v2598
                %v2600 = vld [vmem:[%s2542 + $0xe0] sm:%s2533]
                %2601 = vst [vmem:[%s2543 + $0xe0] sm:%s2533] %v2600
                %v2602 = vld [vmem:[%s2542 + $0xe8] sm:%s2533]
                %2603 = vst [vmem:[%s2543 + $0xe8] sm:%s2533] %v2602
                %v2604 = vld [vmem:[%s2542 + $0xf0] sm:%s2533]
                %2605 = vst [vmem:[%s2543 + $0xf0] sm:%s2533] %v2604
                %v2606 = vld [vmem:[%s2542 + $0xf8] sm:%s2533]
                %2607 = vst [vmem:[%s2543 + $0xf8] sm:%s2533] %v2606
                %s2608 = sadd.s32 1, %s2541
                %p2609 = scmp.ge.s32.totalorder %s2608, %s2534
                %s2610 = scalar_select %p2609, 0, %s2608
                %s2611 = smul.u32 %s2610, 256
                %s2612 = smul.u32 %s2610, 256
                %s2613 = scalar_lea.vmem %s2513, %s2611 [#allocation2]
                %s2614 = scalar_lea.vmem %s2524, %s2612
              $region69: #{minst_nn_forward.1} parent=63 // loop_footer
                %s2538 = sadd.s32 %s2536, 1
              $region70: #{minst_nn_forward.1} parent=63 // loop_footer_branch
                %2535 = sbr.rel target = $region66
              $region71: #{minst_nn_forward.1} parent=63 // loop_exit
                _
              %s2615 = sshrl.u32 %s2520, 5
              %s2616 = sand.u32 %s2520, 31
              %s2617 = smul.u32 %s2615, 32
              %s2618 = smul.u32 8, %s2617
              %s2619 = scalar_lea.vmem %s2513, %s2618 [#allocation2]
              %s2620 = smul.u32 8, %s2617
              %s2621 = scalar_lea.vmem %s2524, %s2620
              // While loop
              $region72: #{minst_nn_forward.1} parent=63 // loop_pre_header
                _
              $region73: #{minst_nn_forward.1} parent=63 // loop_header
                %s2623 = sphi 0, %s2625
                %p2624 = scmp.ge.s32.totalorder %s2623, %s2616
                %s2628 = sphi 0, %s2635
                %s2629 = sphi %s2619, %s2638
                %s2630 = sphi %s2621, %s2639
              $region74: #{minst_nn_forward.1} parent=63 // loop_header_branch
                %2627 = sbr.rel (%p2624) target = $region78
              $region75: #{minst_nn_forward.1} parent=63 // loop_body
                %v2631 = vld [vmem:[%s2629] sm:%s2533]
                %2632 = vst [vmem:[%s2630] sm:%s2533] %v2631
                %s2633 = sadd.s32 1, %s2628
                %p2634 = scmp.ge.s32.totalorder %s2633, %s2616
                %s2635 = scalar_select %p2634, 0, %s2633
                %s2636 = smul.u32 %s2635, 8
                %s2637 = smul.u32 %s2635, 8
                %s2638 = scalar_lea.vmem %s2619, %s2636 [#allocation2]
                %s2639 = scalar_lea.vmem %s2621, %s2637
              $region76: #{minst_nn_forward.1} parent=63 // loop_footer
                %s2625 = sadd.s32 %s2623, 1
              $region77: #{minst_nn_forward.1} parent=63 // loop_footer_branch
                %2622 = sbr.rel target = $region73
              $region78: #{minst_nn_forward.1} parent=63 // loop_exit
                _
            $region64: #{minst_nn_forward.1} parent=55 // pred_fallthru
              _
          $region56: #{minst_nn_forward.1} parent=51 // pred_fallthru
            _
          %2750 = vnop
        $region52: #{minst_nn_forward.1} parent=47 // pred_fallthru
          _
      $region48: #{minst_nn_forward.1} parent=5 // pred_fallthru
        _
      %p2751 = scmp.le.s32.totalorder 2, %s13
      // Predicated region
      $region101: #{minst_nn_forward.1} parent=5 // pred_check
        %p2752 = pneg %p2751
      $region102: #{minst_nn_forward.1} parent=5 // pred_check_branch
        %2754 = sbr.rel (%p2752) target = $region104
      $region103: #{minst_nn_forward.1} parent=5 // pred_region
        %s2755 = ssub.s32 %s13, 2
        // Predicated region
        $region105: #{minst_nn_forward.1} parent=103 // pred_check
          %p2756 = pneg %p194
        $region106: #{minst_nn_forward.1} parent=103 // pred_check_branch
          %2758 = sbr.rel (%p2756) target = $region108
        $region107: #{minst_nn_forward.1} parent=103 // pred_region
          %s2759 = sand.u32 %s179, 1
          %s2760 = sand.u32 %s179, 1
          %s2761 = smul.addr %s2760, 256
          %s2762 = scalar_lea.vmem [#allocation2], %s2761
        $region108: #{minst_nn_forward.1} parent=103 // pred_fallthru
          _
      $region104: #{minst_nn_forward.1} parent=5 // pred_fallthru
        _
    $region6: #{minst_nn_forward.1} parent=1 // loop_footer
      %s17 = sadd.s32 1, %s13
    $region7: #{minst_nn_forward.1} parent=1 // loop_footer_branch
      %12 = sbr.rel target = $region3
    $region8: #{minst_nn_forward.1} parent=1 // loop_exit
      _

</llo_original>
